<compile_context>
chip_gen: v5e
topology: v5e:2x2
jax: 0.10.0
libtpu: 0.0.40
codegen_flags: <defaults>
</compile_context>

<pallas_src>
import functools

import jax
import jax.numpy as jnp
from jax import lax
from jax.experimental import pallas as pl
from jax.experimental.pallas import tpu as pltpu

EPS = 1e-5
EXPANSION = 4
VMEM_LIMIT = 48 * 1024 * 1024

_ROW_TILES = (512, 256, 128, 64, 32, 16)
_COL_TILES = (512, 384, 256, 128)


def _round_up(x, m):
    return (x + m - 1) // m * m


def _pad_rows(m):
    """Padded row count: multiple of 512 for large M, of 16 for small M."""
    return _round_up(m, 512) if m >= 512 else _round_up(m, 16)


def _pick_tile(size, candidates):
    for c in candidates:
        if size % c == 0:
            return c
    return size


def _pad2d(a, rows, cols):
    r0, c0 = a.shape
    return jnp.pad(a, ((0, rows - r0), (0, cols - c0)))


def _pad1d(a, size):
    return jnp.pad(a, (0, size - a.shape[0]))


# ----------------------------------------------------------------------------
# Kernel 1: tiled matmul  Y = X @ W  with per-channel sum / sum-of-squares
# ----------------------------------------------------------------------------
def _matmul_stats_kernel(x_ref, w_ref, y_ref, psum_ref, psq_ref, acc_ref):
    k = pl.program_id(2)

    @pl.when(k == 0)
    def _():
        acc_ref[...] = jnp.zeros_like(acc_ref)

    acc_ref[...] += jnp.dot(x_ref[...], w_ref[...],
                            preferred_element_type=jnp.float32)

    @pl.when(k == pl.num_programs(2) - 1)
    def _():
        y = acc_ref[...]
        y_ref[...] = y.astype(y_ref.dtype)
        s = jnp.sum(y, axis=0, keepdims=True)        # (1, tn) partial col sum
        q = jnp.sum(y * y, axis=0, keepdims=True)    # (1, tn) partial col sumsq
        psum_ref[...] = jnp.broadcast_to(s, psum_ref.shape)
        psq_ref[...] = jnp.broadcast_to(q, psq_ref.shape)


def matmul_stats(x, w):
    """Tiled matmul y = x @ w plus per-output-channel sum and sum-of-squares.

    x: (M, K), w: (K, N).  M multiple of 16, K and N multiples of 128 (padded
    by the caller).  Returns y (M, N) in x.dtype, col_sum (N,), col_sumsq (N,).
    """
    m, kdim = x.shape
    _, ncol = w.shape
    tm = _pick_tile(m, _ROW_TILES)
    tk = _pick_tile(kdim, _COL_TILES)
    tn = _pick_tile(ncol, _COL_TILES)
    gi, gj, gk = m // tm, ncol // tn, kdim // tk

    y, psum, psq = pl.pallas_call(
        _matmul_stats_kernel,
        out_shape=(
            jax.ShapeDtypeStruct((m, ncol), x.dtype),
            jax.ShapeDtypeStruct((gi * 8, ncol), jnp.float32),
            jax.ShapeDtypeStruct((gi * 8, ncol), jnp.float32),
        ),
        grid_spec=pltpu.PrefetchScalarGridSpec(
            num_scalar_prefetch=0,
            grid=(gi, gj, gk),
            in_specs=[
                pl.BlockSpec((tm, tk), lambda i, j, k: (i, k)),
                pl.BlockSpec((tk, tn), lambda i, j, k: (k, j)),
            ],
            out_specs=[
                pl.BlockSpec((tm, tn), lambda i, j, k: (i, j)),
                pl.BlockSpec((8, tn), lambda i, j, k: (i, j)),
                pl.BlockSpec((8, tn), lambda i, j, k: (i, j)),
            ],
            scratch_shapes=[pltpu.VMEM((tm, tn), jnp.float32)],
        ),
        compiler_params=pltpu.CompilerParams(
            dimension_semantics=("parallel", "parallel", "arbitrary"),
            vmem_limit_bytes=VMEM_LIMIT,
        ),
    )(x, w)

    # Tiny host-of-kernel reduction over row tiles (gi x ncol elements).
    col_sum = jnp.sum(psum.reshape(gi, 8, ncol)[:, 0, :], axis=0)
    col_sq = jnp.sum(psq.reshape(gi, 8, ncol)[:, 0, :], axis=0)
    return y, col_sum, col_sq


# ----------------------------------------------------------------------------
# BN folding: training-mode BatchNorm (batch mean, biased var, eps=1e-5)
# folded into a per-channel scale / shift (single FMA per element in-kernel).
# ----------------------------------------------------------------------------
def bn_fold(gamma, beta, col_sum, col_sq, count):
    mean = col_sum / count
    var = jnp.maximum(col_sq / count - mean * mean, 0.0)
    scale = gamma * lax.rsqrt(var + EPS)
    shift = beta - mean * scale
    return (scale.reshape(1, -1).astype(jnp.float32),
            shift.reshape(1, -1).astype(jnp.float32))


# ----------------------------------------------------------------------------
# Kernel 2: elementwise   out = [relu]( y*scale + shift  [+ residual] )
#           residual is either raw (identity shortcut) or its own BN'd
#           projection (r*res_scale + res_shift), fused in the same pass.
# ----------------------------------------------------------------------------
def _make_bn_apply_kernel(relu, res_kind, tm, valid_rows):
    def kernel(*refs):
        if res_kind == "bn":
            y_ref, sc_ref, sh_ref, r_ref, rsc_ref, rsh_ref, o_ref = refs
        elif res_kind == "raw":
            y_ref, sc_ref, sh_ref, r_ref, o_ref = refs
        else:
            y_ref, sc_ref, sh_ref, o_ref = refs

        out = y_ref[...].astype(jnp.float32) * sc_ref[...] + sh_ref[...]
        if res_kind == "bn":
            out = out + (r_ref[...].astype(jnp.float32) * rsc_ref[...]
                         + rsh_ref[...])
        elif res_kind == "raw":
            out = out + r_ref[...].astype(jnp.float32)
        if relu:
            out = jnp.maximum(out, 0.0)
        if valid_rows is not None:
            rows = (pl.program_id(0) * tm
                    + lax.broadcasted_iota(jnp.int32, out.shape, 0))
            out = jnp.where(rows < valid_rows, out, 0.0)
        o_ref[...] = out.astype(o_ref.dtype)

    return kernel


def bn_apply(y, scale, shift, *, residual=None, res_scale=None, res_shift=None,
             relu=True, valid_rows=None, out_dtype=jnp.float32):
    m, ncol = y.shape
    tm = _pick_tile(m, _ROW_TILES)
    tn = _pick_tile(ncol, _COL_TILES)
    gi, gj = m // tm, ncol // tn

    row_spec = pl.BlockSpec((tm, tn), lambda i, j: (i, j))
    vec_spec = pl.BlockSpec((1, tn), lambda i, j: (0, j))

    res_kind = "none"
    args = [y, scale, shift]
    in_specs = [row_spec, vec_spec, vec_spec]
    if residual is not None:
        args.append(residual)
        in_specs.append(row_spec)
        if res_scale is not None:
            res_kind = "bn"
            args += [res_scale, res_shift]
            in_specs += [vec_spec, vec_spec]
        else:
            res_kind = "raw"

    mask_rows = valid_rows if (valid_rows is not None and valid_rows < m) else None
    kernel = _make_bn_apply_kernel(relu, res_kind, tm, mask_rows)

    return pl.pallas_call(
        kernel,
        out_shape=jax.ShapeDtypeStruct((m, ncol), out_dtype),
        grid_spec=pltpu.PrefetchScalarGridSpec(
            num_scalar_prefetch=0,
            grid=(gi, gj),
            in_specs=in_specs,
            out_specs=pl.BlockSpec((tm, tn), lambda i, j: (i, j)),
        ),
        compiler_params=pltpu.CompilerParams(
            dimension_semantics=("parallel", "parallel"),
            vmem_limit_bytes=VMEM_LIMIT,
        ),
    )(*args)


# ----------------------------------------------------------------------------
# Glue: patch extraction for the 3x3 / stride-s / pad-1 conv
# ----------------------------------------------------------------------------
def im2col_3x3(x_nhwc, stride):
    # TODO(synk): fuse the 9 conv taps into the matmul grid (halo'd BlockSpec /
    # per-tap K-reduction) so the 9x patch tensor never materializes in HBM.
    n, h, w, c = x_nhwc.shape
    xp = jnp.pad(x_nhwc, ((0, 0), (1, 1), (1, 1), (0, 0)))
    ho = (h + 2 - 3) // stride + 1
    wo = (w + 2 - 3) // stride + 1
    patches = []
    for dy in range(3):
        for dx in range(3):
            patches.append(
                xp[:, dy:dy + stride * (ho - 1) + 1:stride,
                      dx:dx + stride * (wo - 1) + 1:stride, :])
    # patch channel order: (ky, kx, cin) -> matches HWIO weight reshape
    return jnp.concatenate(patches, axis=-1), ho, wo


# ----------------------------------------------------------------------------
# Bottleneck forward
# ----------------------------------------------------------------------------
@functools.partial(jax.jit, static_argnames=("stride", "compute_dtype"))
def bottleneck_forward(x_nchw, params, stride, compute_dtype=jnp.bfloat16):
    n, cin, h, w = x_nchw.shape
    planes = params["w1"].shape[1]
    cout = EXPANSION * planes

    cinp = _round_up(cin, 128)
    pp = _round_up(planes, 128)
    coutp = _round_up(cout, 128)

    x = jnp.transpose(x_nchw, (0, 2, 3, 1)).astype(compute_dtype)       # NHWC
    x = jnp.pad(x, ((0, 0), (0, 0), (0, 0), (0, cinp - cin)))

    # ---- conv1 (1x1) + bn1 + relu ------------------------------------------
    m1 = n * h * w
    m1p = _pad_rows(m1)
    x1 = jnp.pad(x.reshape(m1, cinp), ((0, m1p - m1), (0, 0)))
    w1 = _pad2d(params["w1"], cinp, pp).astype(compute_dtype)
    y1, s1, q1 = matmul_stats(x1, w1)
    sc1, sh1 = bn_fold(_pad1d(params["g1"], pp), _pad1d(params["b1"], pp),
                       s1, q1, m1)
    a1 = bn_apply(y1, sc1, sh1, relu=True, valid_rows=m1,
                  out_dtype=compute_dtype)
    a1 = a1[:m1].reshape(n, h, w, pp)

    # ---- conv2 (3x3, stride, pad=1) + bn2 + relu ----------------------------
    patches, ho, wo = im2col_3x3(a1, stride)
    m2 = n * ho * wo
    m2p = _pad_rows(m2)
    x2 = jnp.pad(patches.reshape(m2, 9 * pp), ((0, m2p - m2), (0, 0)))
    w2 = jnp.pad(params["w2"],
                 ((0, 0), (0, 0), (0, pp - planes), (0, pp - planes)))
    w2 = w2.reshape(9 * pp, pp).astype(compute_dtype)
    y2, s2, q2 = matmul_stats(x2, w2)
    sc2, sh2 = bn_fold(_pad1d(params["g2"], pp), _pad1d(params["b2"], pp),
                       s2, q2, m2)
    # valid_rows mask zeroes padded rows so conv3's batch statistics stay exact
    a2 = bn_apply(y2, sc2, sh2, relu=True, valid_rows=m2,
                  out_dtype=compute_dtype)

    # ---- conv3 (1x1) + bn3 ---------------------------------------------------
    w3 = _pad2d(params["w3"], pp, coutp).astype(compute_dtype)
    y3, s3, q3 = matmul_stats(a2, w3)
    sc3, sh3 = bn_fold(_pad1d(params["g3"], coutp), _pad1d(params["b3"], coutp),
                       s3, q3, m2)

    # ---- shortcut + fused residual add + relu --------------------------------
    if "w_sc" in params:                 # projection shortcut: conv(1x1,s) + BN
        xs = x[:, ::stride, ::stride, :].reshape(m2, cinp)
        xs = jnp.pad(xs, ((0, m2p - m2), (0, 0)))
        wsc = _pad2d(params["w_sc"], cinp, coutp).astype(compute_dtype)
        ysc, ssc, qsc = matmul_stats(xs, wsc)
        scs, shs = bn_fold(_pad1d(params["g_sc"], coutp),
                           _pad1d(params["b_sc"], coutp), ssc, qsc, m2)
        out = bn_apply(y3, sc3, sh3, residual=ysc, res_scale=scs,
                       res_shift=shs, relu=True, out_dtype=jnp.float32)
    else:                                # identity shortcut: raw x (m1 == m2)
        res = jnp.pad(x.reshape(m2, cinp), ((0, m2p - m2), (0, 0)))
        out = bn_apply(y3, sc3, sh3, residual=res, relu=True,
                       out_dtype=jnp.float32)

    out = out[:m2, :cout].reshape(n, ho, wo, cout)
    return jnp.transpose(out, (0, 3, 1, 2))      # back to NCHW


# ----------------------------------------------------------------------------
# Deterministic parameter init (shapes from Bottleneck.__init__)
# ----------------------------------------------------------------------------
def init_params(key, in_planes, planes, stride):
    cout = EXPANSION * planes
    k = jax.random.split(key, 12)
    p = {
        "w1": 0.1 * jax.random.normal(k[0], (in_planes, planes), jnp.float32),
        "g1": 1.0 + 0.1 * jax.random.normal(k[1], (planes,), jnp.float32),
        "b1": 0.05 * jax.random.normal(k[2], (planes,), jnp.float32),
        "w2": 0.1 * jax.random.normal(k[3], (3, 3, planes, planes), jnp.float32),
        "g2": 1.0 + 0.1 * jax.random.normal(k[4], (planes,), jnp.float32),
        "b2": 0.05 * jax.random.normal(k[5], (planes,), jnp.float32),
        "w3": 0.1 * jax.random.normal(k[6], (planes, cout), jnp.float32),
        "g3": 1.0 + 0.1 * jax.random.normal(k[7], (cout,), jnp.float32),
        "b3": 0.05 * jax.random.normal(k[8], (cout,), jnp.float32),
    }
    if stride != 1 or in_planes != cout:
        p["w_sc"] = 0.1 * jax.random.normal(k[9], (in_planes, cout), jnp.float32)
        p["g_sc"] = 1.0 + 0.1 * jax.random.normal(k[10], (cout,), jnp.float32)
        p["b_sc"] = 0.05 * jax.random.normal(k[11], (cout,), jnp.float32)
    return p


# ----------------------------------------------------------------------------
# Pure-JAX reference (lax.conv) for correctness checking
# ----------------------------------------------------------------------------
def _ref_bn(y, gamma, beta):
    mean = jnp.mean(y, axis=(0, 1, 2), keepdims=True)
    var = jnp.mean(jnp.square(y - mean), axis=(0, 1, 2), keepdims=True)
    return (y - mean) * lax.rsqrt(var + EPS) * gamma + beta


def _ref_conv(x, w_hwio, stride, padding):
    return lax.conv_general_dilated(
        x, w_hwio, (stride, stride), padding,
        dimension_numbers=("NHWC", "HWIO", "NHWC"))


def ref_bottleneck(x_nchw, params, stride):
    x = jnp.transpose(x_nchw, (0, 2, 3, 1)).astype(jnp.float32)
    cin = x.shape[-1]
    planes = params["w1"].shape[1]
    cout = EXPANSION * planes
    o = jax.nn.relu(_ref_bn(
        _ref_conv(x, params["w1"].reshape(1, 1, cin, planes), 1, "VALID"),
        params["g1"], params["b1"]))
    o = jax.nn.relu(_ref_bn(
        _ref_conv(o, params["w2"], stride, [(1, 1), (1, 1)]),
        params["g2"], params["b2"]))
    o = _ref_bn(
        _ref_conv(o, params["w3"].reshape(1, 1, planes, cout), 1, "VALID"),
        params["g3"], params["b3"])
    if "w_sc" in params:
        sc = _ref_bn(
            _ref_conv(x, params["w_sc"].reshape(1, 1, cin, cout), stride, "VALID"),
            params["g_sc"], params["b_sc"])
    else:
        sc = x
    return jnp.transpose(jax.nn.relu(o + sc), (0, 3, 1, 2))


if __name__ == "__main__":
    key = jax.random.PRNGKey(0)
    kx, kp1, kp2 = jax.random.split(key, 3)

    n, in_planes, planes, h, w = 2, 16, 4, 8, 8
    x = jax.random.normal(kx, (n, in_planes, h, w), jnp.float32)  # NCHW

    # ---- case 1: identity shortcut (stride=1, in_planes == 4*planes) ----
    params1 = init_params(kp1, in_planes, planes, stride=1)
    ref1 = ref_bottleneck(x, params1, 1)
    out1 = jax.block_until_ready(
        bottleneck_forward(x, params1, stride=1, compute_dtype=jnp.float32))
    assert out1.shape == (n, EXPANSION * planes, h, w)
    assert jnp.allclose(out1, ref1, atol=1e-2, rtol=1e-2), "f32 case1 mismatch"
    out1_bf = jax.block_until_ready(
        bottleneck_forward(x, params1, stride=1, compute_dtype=jnp.bfloat16))
    assert jnp.allclose(out1_bf, ref1, atol=2e-1, rtol=2e-1), "bf16 case1 mismatch"

    # ---- case 2: projection shortcut (stride=2) ----
    params2 = init_params(kp2, in_planes, planes, stride=2)
    ref2 = ref_bottleneck(x, params2, 2)
    out2 = jax.block_until_ready(
        bottleneck_forward(x, params2, stride=2, compute_dtype=jnp.float32))
    assert out2.shape == (n, EXPANSION * planes, h // 2, w // 2)
    assert jnp.allclose(out2, ref2, atol=1e-2, rtol=1e-2), "f32 case2 mismatch"
    out2_bf = jax.block_until_ready(
        bottleneck_forward(x, params2, stride=2, compute_dtype=jnp.bfloat16))
    assert jnp.allclose(out2_bf, ref2, atol=2e-1, rtol=2e-1), "bf16 case2 mismatch"

    print("KERNEL_OK")
</pallas_src>

<mosaic_0001>
module attributes {stable_mosaic.version = 11 : i64} {
  func.func @_matmul_stats_kernel(%arg0: i32, %arg1: i32, %arg2: i32, %arg3: memref<128x128xf32, #tpu.memory_space<vmem>>, %arg4: memref<128x128xf32, #tpu.memory_space<vmem>>, %arg5: memref<128x128xf32, #tpu.memory_space<vmem>>, %arg6: memref<8x128xf32, #tpu.memory_space<vmem>>, %arg7: memref<8x128xf32, #tpu.memory_space<vmem>>, %arg8: memref<128x128xf32, #tpu.memory_space<vmem>>) attributes {dimension_semantics = [#tpu.dimension_semantics<parallel>, #tpu.dimension_semantics<parallel>, #tpu.dimension_semantics<arbitrary>], iteration_bounds = array<i64: 1, 1, 1>, scalar_prefetch = 0 : i64, scratch_operands = 1 : i64, tpu.core_type = #tpu.core_type<tc>, window_params = [{transform_indices = @transform_0, window_bounds = array<i64: 128, 128>}, {transform_indices = @transform_1, window_bounds = array<i64: 128, 128>}, {transform_indices = @transform_2, window_bounds = array<i64: 128, 128>}, {transform_indices = @transform_3, window_bounds = array<i64: 8, 128>}, {transform_indices = @transform_4, window_bounds = array<i64: 8, 128>}]} {
    %c0_i32 = arith.constant 0 : i32
    %0 = arith.cmpi eq, %arg2, %c0_i32 : i32
    %1 = arith.extui %0 : i1 to i32
    %c0_i32_0 = arith.constant 0 : i32
    %2 = arith.cmpi ne, %1, %c0_i32_0 : i32
    scf.if %2 {
      %cst_10 = arith.constant 0.000000e+00 : f32
      %12 = vector.broadcast %cst_10 : f32 to vector<128x128xf32>
      %c0_11 = arith.constant 0 : index
      %c0_12 = arith.constant 0 : index
      %13 = vector.load %arg8[%c0_11, %c0_12] : memref<128x128xf32, #tpu.memory_space<vmem>>, vector<128x128xf32>
      tpu.vector_store %arg8[%c0_11, %c0_12], %12 {strides = array<i32>} : memref<128x128xf32, #tpu.memory_space<vmem>>, vector<128x128xf32>,
    } else {
    }
    %c0 = arith.constant 0 : index
    %c0_1 = arith.constant 0 : index
    %3 = vector.load %arg8[%c0, %c0_1] : memref<128x128xf32, #tpu.memory_space<vmem>>, vector<128x128xf32>
    %c0_2 = arith.constant 0 : index
    %c0_3 = arith.constant 0 : index
    %4 = vector.load %arg3[%c0_2, %c0_3] : memref<128x128xf32, #tpu.memory_space<vmem>>, vector<128x128xf32>
    %c0_4 = arith.constant 0 : index
    %c0_5 = arith.constant 0 : index
    %5 = vector.load %arg4[%c0_4, %c0_5] : memref<128x128xf32, #tpu.memory_space<vmem>>, vector<128x128xf32>
    %cst = arith.constant dense<0.000000e+00> : vector<128x128xf32>
    %6 = tpu.matmul %4, %5, %cst {dimension_numbers = #tpu.dot_dimension_numbers<[1], [0], [0], [1], [0, 0, 1, 1], [], []>} : vector<128x128xf32>, vector<128x128xf32>, vector<128x128xf32> -> vector<128x128xf32>
    %7 = arith.addf %3, %6 : vector<128x128xf32>
    %c0_6 = arith.constant 0 : index
    %c0_7 = arith.constant 0 : index
    %8 = vector.load %arg8[%c0_6, %c0_7] : memref<128x128xf32, #tpu.memory_space<vmem>>, vector<128x128xf32>
    tpu.vector_store %arg8[%c0_6, %c0_7], %7 {strides = array<i32>} : memref<128x128xf32, #tpu.memory_space<vmem>>, vector<128x128xf32>,
    %c0_i32_8 = arith.constant 0 : i32
    %9 = arith.cmpi eq, %arg2, %c0_i32_8 : i32
    %10 = arith.extui %9 : i1 to i32
    %c0_i32_9 = arith.constant 0 : i32
    %11 = arith.cmpi ne, %10, %c0_i32_9 : i32
    scf.if %11 {
      %c0_10 = arith.constant 0 : index
      %c0_11 = arith.constant 0 : index
      %12 = vector.load %arg8[%c0_10, %c0_11] : memref<128x128xf32, #tpu.memory_space<vmem>>, vector<128x128xf32>
      %c0_12 = arith.constant 0 : index
      %c0_13 = arith.constant 0 : index
      %13 = vector.load %arg5[%c0_12, %c0_13] : memref<128x128xf32, #tpu.memory_space<vmem>>, vector<128x128xf32>
      tpu.vector_store %arg5[%c0_12, %c0_13], %12 {strides = array<i32>} : memref<128x128xf32, #tpu.memory_space<vmem>>, vector<128x128xf32>,
      %cst_14 = arith.constant dense<0.000000e+00> : vector<128xf32>
      %14 = vector.multi_reduction <add>, %12, %cst_14 [0] : vector<128x128xf32> to vector<128xf32>
      %15 = vector.shape_cast %14 : vector<128xf32> to vector<1x128xf32>
      %16 = arith.mulf %12, %12 : vector<128x128xf32>
      %cst_15 = arith.constant dense<0.000000e+00> : vector<128xf32>
      %17 = vector.multi_reduction <add>, %16, %cst_15 [0] : vector<128x128xf32> to vector<128xf32>
      %18 = vector.shape_cast %17 : vector<128xf32> to vector<1x128xf32>
      %19 = vector.shape_cast %15 : vector<1x128xf32> to vector<1x128xf32>
      %20 = vector.broadcast %19 : vector<1x128xf32> to vector<8x128xf32>
      %c0_16 = arith.constant 0 : index
      %c0_17 = arith.constant 0 : index
      %21 = vector.load %arg6[%c0_16, %c0_17] : memref<8x128xf32, #tpu.memory_space<vmem>>, vector<8x128xf32>
      tpu.vector_store %arg6[%c0_16, %c0_17], %20 {strides = array<i32>} : memref<8x128xf32, #tpu.memory_space<vmem>>, vector<8x128xf32>,
      %22 = vector.shape_cast %18 : vector<1x128xf32> to vector<1x128xf32>
      %23 = vector.broadcast %22 : vector<1x128xf32> to vector<8x128xf32>
      %c0_18 = arith.constant 0 : index
      %c0_19 = arith.constant 0 : index
      %24 = vector.load %arg7[%c0_18, %c0_19] : memref<8x128xf32, #tpu.memory_space<vmem>>, vector<8x128xf32>
      tpu.vector_store %arg7[%c0_18, %c0_19], %23 {strides = array<i32>} : memref<8x128xf32, #tpu.memory_space<vmem>>, vector<8x128xf32>,
    } else {
    }
    return
  }
  func.func @transform_0(%arg0: i32, %arg1: i32, %arg2: i32) -> (i32, i32) {
    %c0_i32 = arith.constant 0 : i32
    return %arg0, %arg2 : i32, i32
  }
  func.func @transform_1(%arg0: i32, %arg1: i32, %arg2: i32) -> (i32, i32) {
    %c0_i32 = arith.constant 0 : i32
    return %arg2, %arg1 : i32, i32
  }
  func.func @transform_2(%arg0: i32, %arg1: i32, %arg2: i32) -> (i32, i32) {
    %c0_i32 = arith.constant 0 : i32
    return %arg0, %arg1 : i32, i32
  }
  func.func @transform_3(%arg0: i32, %arg1: i32, %arg2: i32) -> (i32, i32) {
    %c0_i32 = arith.constant 0 : i32
    return %arg0, %arg1 : i32, i32
  }
  func.func @transform_4(%arg0: i32, %arg1: i32, %arg2: i32) -> (i32, i32) {
    %c0_i32 = arith.constant 0 : i32
    return %arg0, %arg1 : i32, i32
  }
}

module attributes {stable_mosaic.version = 11 : i64} {
  func.func @kernel(%arg0: i32, %arg1: i32, %arg2: memref<128x128xf32, #tpu.memory_space<vmem>>, %arg3: memref<1x128xf32, #tpu.memory_space<vmem>>, %arg4: memref<1x128xf32, #tpu.memory_space<vmem>>, %arg5: memref<128x128xf32, #tpu.memory_space<vmem>>) attributes {dimension_semantics = [#tpu.dimension_semantics<parallel>, #tpu.dimension_semantics<parallel>], iteration_bounds = array<i64: 1, 1>, scalar_prefetch = 0 : i64, scratch_operands = 0 : i64, tpu.core_type = #tpu.core_type<tc>, window_params = [{transform_indices = @transform_0, window_bounds = array<i64: 128, 128>}, {transform_indices = @transform_1, window_bounds = array<i64: 1, 128>}, {transform_indices = @transform_2, window_bounds = array<i64: 1, 128>}, {transform_indices = @transform_3, window_bounds = array<i64: 128, 128>}]} {
    %c0 = arith.constant 0 : index
    %c0_0 = arith.constant 0 : index
    %0 = vector.load %arg2[%c0, %c0_0] : memref<128x128xf32, #tpu.memory_space<vmem>>, vector<128x128xf32>
    %c0_1 = arith.constant 0 : index
    %c0_2 = arith.constant 0 : index
    %1 = vector.load %arg3[%c0_1, %c0_2] : memref<1x128xf32, #tpu.memory_space<vmem>>, vector<1x128xf32>
    %2 = vector.broadcast %1 : vector<1x128xf32> to vector<128x128xf32>
    %3 = arith.mulf %0, %2 : vector<128x128xf32>
    %c0_3 = arith.constant 0 : index
    %c0_4 = arith.constant 0 : index
    %4 = vector.load %arg4[%c0_3, %c0_4] : memref<1x128xf32, #tpu.memory_space<vmem>>, vector<1x128xf32>
    %5 = vector.broadcast %4 : vector<1x128xf32> to vector<128x128xf32>
    %6 = arith.addf %3, %5 : vector<128x128xf32>
    %cst = arith.constant 0.000000e+00 : f32
    %7 = vector.broadcast %cst : f32 to vector<128x128xf32>
    %8 = arith.maximumf %6, %7 : vector<128x128xf32>
    %c0_5 = arith.constant 0 : index
    %c0_6 = arith.constant 0 : index
    %9 = vector.load %arg5[%c0_5, %c0_6] : memref<128x128xf32, #tpu.memory_space<vmem>>, vector<128x128xf32>
    tpu.vector_store %arg5[%c0_5, %c0_6], %8 {strides = array<i32>} : memref<128x128xf32, #tpu.memory_space<vmem>>, vector<128x128xf32>,
    return
  }
  func.func @transform_0(%arg0: i32, %arg1: i32) -> (i32, i32) {
    %c0_i32 = arith.constant 0 : i32
    return %arg0, %arg1 : i32, i32
  }
  func.func @transform_1(%arg0: i32, %arg1: i32) -> (i32, i32) {
    %c0_i32 = arith.constant 0 : i32
    %c0_i32_0 = arith.constant 0 : i32
    return %c0_i32, %arg1 : i32, i32
  }
  func.func @transform_2(%arg0: i32, %arg1: i32) -> (i32, i32) {
    %c0_i32 = arith.constant 0 : i32
    %c0_i32_0 = arith.constant 0 : i32
    return %c0_i32, %arg1 : i32, i32
  }
  func.func @transform_3(%arg0: i32, %arg1: i32) -> (i32, i32) {
    %c0_i32 = arith.constant 0 : i32
    return %arg0, %arg1 : i32, i32
  }
}

module attributes {stable_mosaic.version = 11 : i64} {
  func.func @_matmul_stats_kernel(%arg0: i32, %arg1: i32, %arg2: i32, %arg3: memref<128x384xf32, #tpu.memory_space<vmem>>, %arg4: memref<384x128xf32, #tpu.memory_space<vmem>>, %arg5: memref<128x128xf32, #tpu.memory_space<vmem>>, %arg6: memref<8x128xf32, #tpu.memory_space<vmem>>, %arg7: memref<8x128xf32, #tpu.memory_space<vmem>>, %arg8: memref<128x128xf32, #tpu.memory_space<vmem>>) attributes {dimension_semantics = [#tpu.dimension_semantics<parallel>, #tpu.dimension_semantics<parallel>, #tpu.dimension_semantics<arbitrary>], iteration_bounds = array<i64: 1, 1, 3>, scalar_prefetch = 0 : i64, scratch_operands = 1 : i64, tpu.core_type = #tpu.core_type<tc>, window_params = [{transform_indices = @transform_0, window_bounds = array<i64: 128, 384>}, {transform_indices = @transform_1, window_bounds = array<i64: 384, 128>}, {transform_indices = @transform_2, window_bounds = array<i64: 128, 128>}, {transform_indices = @transform_3, window_bounds = array<i64: 8, 128>}, {transform_indices = @transform_4, window_bounds = array<i64: 8, 128>}]} {
    %c0_i32 = arith.constant 0 : i32
    %0 = arith.cmpi eq, %arg2, %c0_i32 : i32
    %1 = arith.extui %0 : i1 to i32
    %c0_i32_0 = arith.constant 0 : i32
    %2 = arith.cmpi ne, %1, %c0_i32_0 : i32
    scf.if %2 {
      %cst_9 = arith.constant 0.000000e+00 : f32
      %12 = vector.broadcast %cst_9 : f32 to vector<128x128xf32>
      %c0_10 = arith.constant 0 : index
      %c0_11 = arith.constant 0 : index
      %13 = vector.load %arg8[%c0_10, %c0_11] : memref<128x128xf32, #tpu.memory_space<vmem>>, vector<128x128xf32>
      tpu.vector_store %arg8[%c0_10, %c0_11], %12 {strides = array<i32>} : memref<128x128xf32, #tpu.memory_space<vmem>>, vector<128x128xf32>,
    } else {
    }
    %c0 = arith.constant 0 : index
    %c0_1 = arith.constant 0 : index
    %3 = vector.load %arg8[%c0, %c0_1] : memref<128x128xf32, #tpu.memory_space<vmem>>, vector<128x128xf32>
    %c0_2 = arith.constant 0 : index
    %c0_3 = arith.constant 0 : index
    %4 = vector.load %arg3[%c0_2, %c0_3] : memref<128x384xf32, #tpu.memory_space<vmem>>, vector<128x384xf32>
    %c0_4 = arith.constant 0 : index
    %c0_5 = arith.constant 0 : index
    %5 = vector.load %arg4[%c0_4, %c0_5] : memref<384x128xf32, #tpu.memory_space<vmem>>, vector<384x128xf32>
    %cst = arith.constant dense<0.000000e+00> : vector<128x128xf32>
    %6 = tpu.matmul %4, %5, %cst {dimension_numbers = #tpu.dot_dimension_numbers<[1], [0], [0], [1], [0, 0, 1, 1], [], []>} : vector<128x384xf32>, vector<384x128xf32>, vector<128x128xf32> -> vector<128x128xf32>
    %7 = arith.addf %3, %6 : vector<128x128xf32>
    %c0_6 = arith.constant 0 : index
    %c0_7 = arith.constant 0 : index
    %8 = vector.load %arg8[%c0_6, %c0_7] : memref<128x128xf32, #tpu.memory_space<vmem>>, vector<128x128xf32>
    tpu.vector_store %arg8[%c0_6, %c0_7], %7 {strides = array<i32>} : memref<128x128xf32, #tpu.memory_space<vmem>>, vector<128x128xf32>,
    %c2_i32 = arith.constant 2 : i32
    %9 = arith.cmpi eq, %arg2, %c2_i32 : i32
    %10 = arith.extui %9 : i1 to i32
    %c0_i32_8 = arith.constant 0 : i32
    %11 = arith.cmpi ne, %10, %c0_i32_8 : i32
    scf.if %11 {
      %c0_9 = arith.constant 0 : index
      %c0_10 = arith.constant 0 : index
      %12 = vector.load %arg8[%c0_9, %c0_10] : memref<128x128xf32, #tpu.memory_space<vmem>>, vector<128x128xf32>
      %c0_11 = arith.constant 0 : index
      %c0_12 = arith.constant 0 : index
      %13 = vector.load %arg5[%c0_11, %c0_12] : memref<128x128xf32, #tpu.memory_space<vmem>>, vector<128x128xf32>
      tpu.vector_store %arg5[%c0_11, %c0_12], %12 {strides = array<i32>} : memref<128x128xf32, #tpu.memory_space<vmem>>, vector<128x128xf32>,
      %cst_13 = arith.constant dense<0.000000e+00> : vector<128xf32>
      %14 = vector.multi_reduction <add>, %12, %cst_13 [0] : vector<128x128xf32> to vector<128xf32>
      %15 = vector.shape_cast %14 : vector<128xf32> to vector<1x128xf32>
      %16 = arith.mulf %12, %12 : vector<128x128xf32>
      %cst_14 = arith.constant dense<0.000000e+00> : vector<128xf32>
      %17 = vector.multi_reduction <add>, %16, %cst_14 [0] : vector<128x128xf32> to vector<128xf32>
      %18 = vector.shape_cast %17 : vector<128xf32> to vector<1x128xf32>
      %19 = vector.shape_cast %15 : vector<1x128xf32> to vector<1x128xf32>
      %20 = vector.broadcast %19 : vector<1x128xf32> to vector<8x128xf32>
      %c0_15 = arith.constant 0 : index
      %c0_16 = arith.constant 0 : index
      %21 = vector.load %arg6[%c0_15, %c0_16] : memref<8x128xf32, #tpu.memory_space<vmem>>, vector<8x128xf32>
      tpu.vector_store %arg6[%c0_15, %c0_16], %20 {strides = array<i32>} : memref<8x128xf32, #tpu.memory_space<vmem>>, vector<8x128xf32>,
      %22 = vector.shape_cast %18 : vector<1x128xf32> to vector<1x128xf32>
      %23 = vector.broadcast %22 : vector<1x128xf32> to vector<8x128xf32>
      %c0_17 = arith.constant 0 : index
      %c0_18 = arith.constant 0 : index
      %24 = vector.load %arg7[%c0_17, %c0_18] : memref<8x128xf32, #tpu.memory_space<vmem>>, vector<8x128xf32>
      tpu.vector_store %arg7[%c0_17, %c0_18], %23 {strides = array<i32>} : memref<8x128xf32, #tpu.memory_space<vmem>>, vector<8x128xf32>,
    } else {
    }
    return
  }
  func.func @transform_0(%arg0: i32, %arg1: i32, %arg2: i32) -> (i32, i32) {
    %c0_i32 = arith.constant 0 : i32
    return %arg0, %arg2 : i32, i32
  }
  func.func @transform_1(%arg0: i32, %arg1: i32, %arg2: i32) -> (i32, i32) {
    %c0_i32 = arith.constant 0 : i32
    return %arg2, %arg1 : i32, i32
  }
  func.func @transform_2(%arg0: i32, %arg1: i32, %arg2: i32) -> (i32, i32) {
    %c0_i32 = arith.constant 0 : i32
    return %arg0, %arg1 : i32, i32
  }
  func.func @transform_3(%arg0: i32, %arg1: i32, %arg2: i32) -> (i32, i32) {
    %c0_i32 = arith.constant 0 : i32
    return %arg0, %arg1 : i32, i32
  }
  func.func @transform_4(%arg0: i32, %arg1: i32, %arg2: i32) -> (i32, i32) {
    %c0_i32 = arith.constant 0 : i32
    return %arg0, %arg1 : i32, i32
  }
}

module attributes {stable_mosaic.version = 11 : i64} {
  func.func @kernel(%arg0: i32, %arg1: i32, %arg2: memref<128x128xf32, #tpu.memory_space<vmem>>, %arg3: memref<1x128xf32, #tpu.memory_space<vmem>>, %arg4: memref<1x128xf32, #tpu.memory_space<vmem>>, %arg5: memref<128x128xf32, #tpu.memory_space<vmem>>, %arg6: memref<128x128xf32, #tpu.memory_space<vmem>>) attributes {dimension_semantics = [#tpu.dimension_semantics<parallel>, #tpu.dimension_semantics<parallel>], iteration_bounds = array<i64: 1, 1>, scalar_prefetch = 0 : i64, scratch_operands = 0 : i64, tpu.core_type = #tpu.core_type<tc>, window_params = [{transform_indices = @transform_0, window_bounds = array<i64: 128, 128>}, {transform_indices = @transform_1, window_bounds = array<i64: 1, 128>}, {transform_indices = @transform_2, window_bounds = array<i64: 1, 128>}, {transform_indices = @transform_3, window_bounds = array<i64: 128, 128>}, {transform_indices = @transform_4, window_bounds = array<i64: 128, 128>}]} {
    %c0 = arith.constant 0 : index
    %c0_0 = arith.constant 0 : index
    %0 = vector.load %arg2[%c0, %c0_0] : memref<128x128xf32, #tpu.memory_space<vmem>>, vector<128x128xf32>
    %c0_1 = arith.constant 0 : index
    %c0_2 = arith.constant 0 : index
    %1 = vector.load %arg3[%c0_1, %c0_2] : memref<1x128xf32, #tpu.memory_space<vmem>>, vector<1x128xf32>
    %2 = vector.broadcast %1 : vector<1x128xf32> to vector<128x128xf32>
    %3 = arith.mulf %0, %2 : vector<128x128xf32>
    %c0_3 = arith.constant 0 : index
    %c0_4 = arith.constant 0 : index
    %4 = vector.load %arg4[%c0_3, %c0_4] : memref<1x128xf32, #tpu.memory_space<vmem>>, vector<1x128xf32>
    %5 = vector.broadcast %4 : vector<1x128xf32> to vector<128x128xf32>
    %6 = arith.addf %3, %5 : vector<128x128xf32>
    %c0_5 = arith.constant 0 : index
    %c0_6 = arith.constant 0 : index
    %7 = vector.load %arg5[%c0_5, %c0_6] : memref<128x128xf32, #tpu.memory_space<vmem>>, vector<128x128xf32>
    %8 = arith.addf %6, %7 : vector<128x128xf32>
    %cst = arith.constant 0.000000e+00 : f32
    %9 = vector.broadcast %cst : f32 to vector<128x128xf32>
    %10 = arith.maximumf %8, %9 : vector<128x128xf32>
    %c0_7 = arith.constant 0 : index
    %c0_8 = arith.constant 0 : index
    %11 = vector.load %arg6[%c0_7, %c0_8] : memref<128x128xf32, #tpu.memory_space<vmem>>, vector<128x128xf32>
    tpu.vector_store %arg6[%c0_7, %c0_8], %10 {strides = array<i32>} : memref<128x128xf32, #tpu.memory_space<vmem>>, vector<128x128xf32>,
    return
  }
  func.func @transform_0(%arg0: i32, %arg1: i32) -> (i32, i32) {
    %c0_i32 = arith.constant 0 : i32
    return %arg0, %arg1 : i32, i32
  }
  func.func @transform_1(%arg0: i32, %arg1: i32) -> (i32, i32) {
    %c0_i32 = arith.constant 0 : i32
    %c0_i32_0 = arith.constant 0 : i32
    return %c0_i32, %arg1 : i32, i32
  }
  func.func @transform_2(%arg0: i32, %arg1: i32) -> (i32, i32) {
    %c0_i32 = arith.constant 0 : i32
    %c0_i32_0 = arith.constant 0 : i32
    return %c0_i32, %arg1 : i32, i32
  }
  func.func @transform_3(%arg0: i32, %arg1: i32) -> (i32, i32) {
    %c0_i32 = arith.constant 0 : i32
    return %arg0, %arg1 : i32, i32
  }
  func.func @transform_4(%arg0: i32, %arg1: i32) -> (i32, i32) {
    %c0_i32 = arith.constant 0 : i32
    return %arg0, %arg1 : i32, i32
  }
}

</mosaic_0001>

<llo_original>
// kernel: bottleneck_forward.6
$region0: #{bottleneck_forward.6}
  #allocation0 [shape = 'u32[]', space=smem, size = 0x4, offset = 0x4, fixed_abs, tag = 'smem constant byte address 0x4 - core index']
  #allocation1 [shape = 'u32[72,128]{1,0:T(1,128)}', space=vmem, size = 0x9000, scoped, tag = 'internal scratch']
  #allocation2 [shape = 'f32[128,128]{1,0:T(8,128)}', space=vmem, size = 0x10000, scoped, tag = 'scratch operand']
  %s0 = inlined_call_operand.vmem [shape: f32[128,128], index: 0, kind: input, shape index: {}]
  %s1 = inlined_call_operand.vmem [shape: f32[128,128], index: 1, kind: input, shape index: {}]
  %s2 = inlined_call_operand.vmem [shape: f32[128,128], index: 2, kind: output, shape index: {0}]
  %s3 = inlined_call_operand.vmem [shape: f32[8,128], index: 3, kind: output, shape index: {1}]
  %s4 = inlined_call_operand.vmem [shape: f32[8,128], index: 4, kind: output, shape index: {2}]
  %5 = xla_tuple %s2, %s3, %s4
  %s6 = sld [smem:[#allocation0]]
  $region42: #{bottleneck_forward.6} parent=0
    _
  %s8 = ssub.s32 1, %s6
  %s9 = scalar_select 0, %s8, %s6
  // Predicated region
  $region2: #{bottleneck_forward.6} parent=0 // pred_check
    _
  $region3: #{bottleneck_forward.6} parent=0 // pred_check_branch
    %11 = sbr.rel (0) target = $region5
  $region4: #{bottleneck_forward.6} parent=0 // pred_region
    _
  $region5: #{bottleneck_forward.6} parent=0 // pred_fallthru
    _
  // Predicated region
  $region6: #{bottleneck_forward.6} parent=0 // pred_check
    _
  $region7: #{bottleneck_forward.6} parent=0 // pred_check_branch
    %13 = sbr.rel (0) target = $region9
  $region8: #{bottleneck_forward.6} parent=0 // pred_region
    _
  $region9: #{bottleneck_forward.6} parent=0 // pred_fallthru
    _
  %p14 = scmp.eq.s32.totalorder 0, 0
  // Predicated region
  $region10: #{bottleneck_forward.6} parent=0 // pred_check
    %p15 = pneg %p14
  $region11: #{bottleneck_forward.6} parent=0 // pred_check_branch
    %17 = sbr.rel (%p15) target = $region13
  $region12: #{bottleneck_forward.6} parent=0 // pred_region
    %18 = vst [vmem:[#allocation2] sm:$0xff] 0.0
    %19 = vst [vmem:[#allocation2 + $0x8] sm:$0xff] 0.0
    %20 = vst [vmem:[#allocation2 + $0x10] sm:$0xff] 0.0
    %21 = vst [vmem:[#allocation2 + $0x18] sm:$0xff] 0.0
    %22 = vst [vmem:[#allocation2 + $0x20] sm:$0xff] 0.0
    %23 = vst [vmem:[#allocation2 + $0x28] sm:$0xff] 0.0
    %24 = vst [vmem:[#allocation2 + $0x30] sm:$0xff] 0.0
    %25 = vst [vmem:[#allocation2 + $0x38] sm:$0xff] 0.0
    %26 = vst [vmem:[#allocation2 + $0x40] sm:$0xff] 0.0
    %27 = vst [vmem:[#allocation2 + $0x48] sm:$0xff] 0.0
    %28 = vst [vmem:[#allocation2 + $0x50] sm:$0xff] 0.0
    %29 = vst [vmem:[#allocation2 + $0x58] sm:$0xff] 0.0
    %30 = vst [vmem:[#allocation2 + $0x60] sm:$0xff] 0.0
    %31 = vst [vmem:[#allocation2 + $0x68] sm:$0xff] 0.0
    %32 = vst [vmem:[#allocation2 + $0x70] sm:$0xff] 0.0
    %33 = vst [vmem:[#allocation2 + $0x78] sm:$0xff] 0.0
  $region13: #{bottleneck_forward.6} parent=0 // pred_fallthru
    _
  %v34 = vld [vmem:[#allocation2] sm:$0xff]
  %v35 = vld [vmem:[#allocation2 + $0x8] sm:$0xff]
  %v36 = vld [vmem:[#allocation2 + $0x10] sm:$0xff]
  %v37 = vld [vmem:[#allocation2 + $0x18] sm:$0xff]
  %v38 = vld [vmem:[#allocation2 + $0x20] sm:$0xff]
  %v39 = vld [vmem:[#allocation2 + $0x28] sm:$0xff]
  %v40 = vld [vmem:[#allocation2 + $0x30] sm:$0xff]
  %v41 = vld [vmem:[#allocation2 + $0x38] sm:$0xff]
  %v42 = vld [vmem:[#allocation2 + $0x40] sm:$0xff]
  %v43 = vld [vmem:[#allocation2 + $0x48] sm:$0xff]
  %v44 = vld [vmem:[#allocation2 + $0x50] sm:$0xff]
  %v45 = vld [vmem:[#allocation2 + $0x58] sm:$0xff]
  %v46 = vld [vmem:[#allocation2 + $0x60] sm:$0xff]
  %v47 = vld [vmem:[#allocation2 + $0x68] sm:$0xff]
  %v48 = vld [vmem:[#allocation2 + $0x70] sm:$0xff]
  %v49 = vld [vmem:[#allocation2 + $0x78] sm:$0xff]
  %v50 = vld [vmem:[%s0] sm:$0xff]
  %v51 = vld [vmem:[%s0 + $0x8] sm:$0xff]
  %v52 = vld [vmem:[%s0 + $0x10] sm:$0xff]
  %v53 = vld [vmem:[%s0 + $0x18] sm:$0xff]
  %v54 = vld [vmem:[%s0 + $0x20] sm:$0xff]
  %v55 = vld [vmem:[%s0 + $0x28] sm:$0xff]
  %v56 = vld [vmem:[%s0 + $0x30] sm:$0xff]
  %v57 = vld [vmem:[%s0 + $0x38] sm:$0xff]
  %v58 = vld [vmem:[%s0 + $0x40] sm:$0xff]
  %v59 = vld [vmem:[%s0 + $0x48] sm:$0xff]
  %v60 = vld [vmem:[%s0 + $0x50] sm:$0xff]
  %v61 = vld [vmem:[%s0 + $0x58] sm:$0xff]
  %v62 = vld [vmem:[%s0 + $0x60] sm:$0xff]
  %v63 = vld [vmem:[%s0 + $0x68] sm:$0xff]
  %v64 = vld [vmem:[%s0 + $0x70] sm:$0xff]
  %v65 = vld [vmem:[%s0 + $0x78] sm:$0xff]
  %v66 = vld [vmem:[%s1] sm:$0xff]
  %v67 = vld [vmem:[%s1 + $0x8] sm:$0xff]
  %v68 = vld [vmem:[%s1 + $0x10] sm:$0xff]
  %v69 = vld [vmem:[%s1 + $0x18] sm:$0xff]
  %v70 = vld [vmem:[%s1 + $0x20] sm:$0xff]
  %v71 = vld [vmem:[%s1 + $0x28] sm:$0xff]
  %v72 = vld [vmem:[%s1 + $0x30] sm:$0xff]
  %v73 = vld [vmem:[%s1 + $0x38] sm:$0xff]
  %v74 = vld [vmem:[%s1 + $0x40] sm:$0xff]
  %v75 = vld [vmem:[%s1 + $0x48] sm:$0xff]
  %v76 = vld [vmem:[%s1 + $0x50] sm:$0xff]
  %v77 = vld [vmem:[%s1 + $0x58] sm:$0xff]
  %v78 = vld [vmem:[%s1 + $0x60] sm:$0xff]
  %v79 = vld [vmem:[%s1 + $0x68] sm:$0xff]
  %v80 = vld [vmem:[%s1 + $0x70] sm:$0xff]
  %v81 = vld [vmem:[%s1 + $0x78] sm:$0xff]
  %82 = vmatpush.msra.mxu0 %v81
  %83 = vmatpush.msra.mxu0 %v80
  %84 = vmatpush.msra.mxu0 %v79
  %85 = vmatpush.msra.mxu0 %v78
  %86 = vmatpush.msra.mxu0 %v77
  %87 = vmatpush.msra.mxu0 %v76
  %88 = vmatpush.msra.mxu0 %v75
  %89 = vmatpush.msra.mxu0 %v74
  %90 = vmatpush.msra.mxu0 %v73
  %91 = vmatpush.msra.mxu0 %v72
  %92 = vmatpush.msra.mxu0 %v71
  %93 = vmatpush.msra.mxu0 %v70
  %94 = vmatpush.msra.mxu0 %v69
  %95 = vmatpush.msra.mxu0 %v68
  %96 = vmatpush.msra.mxu0 %v67
  %97 = vmatpush.msra.mxu0 %v66
  %98 = vmatmul.f32.gmra.mxu0 %v50
  %v99 = vpop.f32.mrf.mxu0
  %v100 = vadd.f32 0.0, %v99
  %101 = vmatmul.f32.gmra.mxu0 %v51
  %v102 = vpop.f32.mrf.mxu0
  %v103 = vadd.f32 0.0, %v102
  %104 = vmatmul.f32.gmra.mxu0 %v52
  %v105 = vpop.f32.mrf.mxu0
  %v106 = vadd.f32 0.0, %v105
  %107 = vmatmul.f32.gmra.mxu0 %v53
  %v108 = vpop.f32.mrf.mxu0
  %v109 = vadd.f32 0.0, %v108
  %110 = vmatmul.f32.gmra.mxu0 %v54
  %v111 = vpop.f32.mrf.mxu0
  %v112 = vadd.f32 0.0, %v111
  %113 = vmatmul.f32.gmra.mxu0 %v55
  %v114 = vpop.f32.mrf.mxu0
  %v115 = vadd.f32 0.0, %v114
  %116 = vmatmul.f32.gmra.mxu0 %v56
  %v117 = vpop.f32.mrf.mxu0
  %v118 = vadd.f32 0.0, %v117
  %119 = vmatmul.f32.gmra.mxu0 %v57
  %v120 = vpop.f32.mrf.mxu0
  %v121 = vadd.f32 0.0, %v120
  %122 = vmatmul.f32.gmra.mxu0 %v58
  %v123 = vpop.f32.mrf.mxu0
  %v124 = vadd.f32 0.0, %v123
  %125 = vmatmul.f32.gmra.mxu0 %v59
  %v126 = vpop.f32.mrf.mxu0
  %v127 = vadd.f32 0.0, %v126
  %128 = vmatmul.f32.gmra.mxu0 %v60
  %v129 = vpop.f32.mrf.mxu0
  %v130 = vadd.f32 0.0, %v129
  %131 = vmatmul.f32.gmra.mxu0 %v61
  %v132 = vpop.f32.mrf.mxu0
  %v133 = vadd.f32 0.0, %v132
  %134 = vmatmul.f32.gmra.mxu0 %v62
  %v135 = vpop.f32.mrf.mxu0
  %v136 = vadd.f32 0.0, %v135
  %137 = vmatmul.f32.gmra.mxu0 %v63
  %v138 = vpop.f32.mrf.mxu0
  %v139 = vadd.f32 0.0, %v138
  %140 = vmatmul.f32.gmra.mxu0 %v64
  %v141 = vpop.f32.mrf.mxu0
  %v142 = vadd.f32 0.0, %v141
  %143 = vmatmul.f32.gmra.mxu0 %v65
  %v144 = vpop.f32.mrf.mxu0
  %v145 = vadd.f32 0.0, %v144
  %146 = vdwg.mxu0
  %v147 = vadd.f32 %v34, %v100
  %v148 = vadd.f32 %v35, %v103
  %v149 = vadd.f32 %v36, %v106
  %v150 = vadd.f32 %v37, %v109
  %v151 = vadd.f32 %v38, %v112
  %v152 = vadd.f32 %v39, %v115
  %v153 = vadd.f32 %v40, %v118
  %v154 = vadd.f32 %v41, %v121
  %v155 = vadd.f32 %v42, %v124
  %v156 = vadd.f32 %v43, %v127
  %v157 = vadd.f32 %v44, %v130
  %v158 = vadd.f32 %v45, %v133
  %v159 = vadd.f32 %v46, %v136
  %v160 = vadd.f32 %v47, %v139
  %v161 = vadd.f32 %v48, %v142
  %v162 = vadd.f32 %v49, %v145
  %163 = vst [vmem:[#allocation2] sm:$0xff] %v147
  %164 = vst [vmem:[#allocation2 + $0x8] sm:$0xff] %v148
  %165 = vst [vmem:[#allocation2 + $0x10] sm:$0xff] %v149
  %166 = vst [vmem:[#allocation2 + $0x18] sm:$0xff] %v150
  %167 = vst [vmem:[#allocation2 + $0x20] sm:$0xff] %v151
  %168 = vst [vmem:[#allocation2 + $0x28] sm:$0xff] %v152
  %169 = vst [vmem:[#allocation2 + $0x30] sm:$0xff] %v153
  %170 = vst [vmem:[#allocation2 + $0x38] sm:$0xff] %v154
  %171 = vst [vmem:[#allocation2 + $0x40] sm:$0xff] %v155
  %172 = vst [vmem:[#allocation2 + $0x48] sm:$0xff] %v156
  %173 = vst [vmem:[#allocation2 + $0x50] sm:$0xff] %v157
  %174 = vst [vmem:[#allocation2 + $0x58] sm:$0xff] %v158
  %175 = vst [vmem:[#allocation2 + $0x60] sm:$0xff] %v159
  %176 = vst [vmem:[#allocation2 + $0x68] sm:$0xff] %v160
  %177 = vst [vmem:[#allocation2 + $0x70] sm:$0xff] %v161
  %178 = vst [vmem:[#allocation2 + $0x78] sm:$0xff] %v162
  // Predicated region
  $region14: #{bottleneck_forward.6} parent=0 // pred_check
    %p179 = pneg %p14
  $region15: #{bottleneck_forward.6} parent=0 // pred_check_branch
    %181 = sbr.rel (%p179) target = $region17
  $region16: #{bottleneck_forward.6} parent=0 // pred_region
    %v182 = vld [vmem:[#allocation2] sm:$0xff]
    %v183 = vld [vmem:[#allocation2 + $0x8] sm:$0xff]
    %v184 = vld [vmem:[#allocation2 + $0x10] sm:$0xff]
    %v185 = vld [vmem:[#allocation2 + $0x18] sm:$0xff]
    %v186 = vld [vmem:[#allocation2 + $0x20] sm:$0xff]
    %v187 = vld [vmem:[#allocation2 + $0x28] sm:$0xff]
    %v188 = vld [vmem:[#allocation2 + $0x30] sm:$0xff]
    %v189 = vld [vmem:[#allocation2 + $0x38] sm:$0xff]
    %v190 = vld [vmem:[#allocation2 + $0x40] sm:$0xff]
    %v191 = vld [vmem:[#allocation2 + $0x48] sm:$0xff]
    %v192 = vld [vmem:[#allocation2 + $0x50] sm:$0xff]
    %v193 = vld [vmem:[#allocation2 + $0x58] sm:$0xff]
    %v194 = vld [vmem:[#allocation2 + $0x60] sm:$0xff]
    %v195 = vld [vmem:[#allocation2 + $0x68] sm:$0xff]
    %v196 = vld [vmem:[#allocation2 + $0x70] sm:$0xff]
    %v197 = vld [vmem:[#allocation2 + $0x78] sm:$0xff]
    %198 = vst [vmem:[%s2] sm:$0xff] %v182
    %199 = vst [vmem:[%s2 + $0x8] sm:$0xff] %v183
    %200 = vst [vmem:[%s2 + $0x10] sm:$0xff] %v184
    %201 = vst [vmem:[%s2 + $0x18] sm:$0xff] %v185
    %202 = vst [vmem:[%s2 + $0x20] sm:$0xff] %v186
    %203 = vst [vmem:[%s2 + $0x28] sm:$0xff] %v187
    %204 = vst [vmem:[%s2 + $0x30] sm:$0xff] %v188
    %205 = vst [vmem:[%s2 + $0x38] sm:$0xff] %v189
    %206 = vst [vmem:[%s2 + $0x40] sm:$0xff] %v190
    %207 = vst [vmem:[%s2 + $0x48] sm:$0xff] %v191
    %208 = vst [vmem:[%s2 + $0x50] sm:$0xff] %v192
    %209 = vst [vmem:[%s2 + $0x58] sm:$0xff] %v193
    %210 = vst [vmem:[%s2 + $0x60] sm:$0xff] %v194
    %211 = vst [vmem:[%s2 + $0x68] sm:$0xff] %v195
    %212 = vst [vmem:[%s2 + $0x70] sm:$0xff] %v196
    %213 = vst [vmem:[%s2 + $0x78] sm:$0xff] %v197
    %v214 = vadd.f32 %v182, %v183
    %v215 = vadd.f32 %v214, %v184
    %v216 = vadd.f32 %v215, %v185
    %v217 = vadd.f32 %v216, %v186
    %v218 = vadd.f32 %v217, %v187
    %v219 = vadd.f32 %v218, %v188
    %v220 = vadd.f32 %v219, %v189
    %v221 = vadd.f32 %v220, %v190
    %v222 = vadd.f32 %v221, %v191
    %v223 = vadd.f32 %v222, %v192
    %v224 = vadd.f32 %v223, %v193
    %v225 = vadd.f32 %v224, %v194
    %v226 = vadd.f32 %v225, %v195
    %v227 = vadd.f32 %v226, %v196
    %v228 = vadd.f32 %v227, %v197
    %v229 = vrot.slane %v228, 4
    %v230 = vadd.f32 %v228, %v229
    %v231 = vrot.slane %v230, 2
    %v232 = vadd.f32 %v230, %v231
    %v233 = vrot.slane %v232, 1
    %v234 = vadd.f32 %v232, %v233
    %v235 = vmul.f32 %v182, %v182
    %v236 = vmul.f32 %v183, %v183
    %v237 = vmul.f32 %v184, %v184
    %v238 = vmul.f32 %v185, %v185
    %v239 = vmul.f32 %v186, %v186
    %v240 = vmul.f32 %v187, %v187
    %v241 = vmul.f32 %v188, %v188
    %v242 = vmul.f32 %v189, %v189
    %v243 = vmul.f32 %v190, %v190
    %v244 = vmul.f32 %v191, %v191
    %v245 = vmul.f32 %v192, %v192
    %v246 = vmul.f32 %v193, %v193
    %v247 = vmul.f32 %v194, %v194
    %v248 = vmul.f32 %v195, %v195
    %v249 = vmul.f32 %v196, %v196
    %v250 = vmul.f32 %v197, %v197
    %v251 = vadd.f32 %v235, %v236
    %v252 = vadd.f32 %v251, %v237
    %v253 = vadd.f32 %v252, %v238
    %v254 = vadd.f32 %v253, %v239
    %v255 = vadd.f32 %v254, %v240
    %v256 = vadd.f32 %v255, %v241
    %v257 = vadd.f32 %v256, %v242
    %v258 = vadd.f32 %v257, %v243
    %v259 = vadd.f32 %v258, %v244
    %v260 = vadd.f32 %v259, %v245
    %v261 = vadd.f32 %v260, %v246
    %v262 = vadd.f32 %v261, %v247
    %v263 = vadd.f32 %v262, %v248
    %v264 = vadd.f32 %v263, %v249
    %v265 = vadd.f32 %v264, %v250
    %v266 = vrot.slane %v265, 4
    %v267 = vadd.f32 %v265, %v266
    %v268 = vrot.slane %v267, 2
    %v269 = vadd.f32 %v267, %v268
    %v270 = vrot.slane %v269, 1
    %v271 = vadd.f32 %v269, %v270
    %272 = vst [vmem:[%s3] sm:$0xff] %v234
    %273 = vst [vmem:[%s4] sm:$0xff] %v271
  $region17: #{bottleneck_forward.6} parent=0 // pred_fallthru
    _
  // Predicated region
  $region18: #{bottleneck_forward.6} parent=0 // pred_check
    _
  $region19: #{bottleneck_forward.6} parent=0 // pred_check_branch
    %275 = sbr.rel (0) target = $region21
  $region20: #{bottleneck_forward.6} parent=0 // pred_region
    _
  $region21: #{bottleneck_forward.6} parent=0 // pred_fallthru
    _
  // Predicated region
  $region22: #{bottleneck_forward.6} parent=0 // pred_check
    _
  $region23: #{bottleneck_forward.6} parent=0 // pred_check_branch
    %277 = sbr.rel (0) target = $region25
  $region24: #{bottleneck_forward.6} parent=0 // pred_region
    _
  $region25: #{bottleneck_forward.6} parent=0 // pred_fallthru
    _
  // Predicated region
  $region26: #{bottleneck_forward.6} parent=0 // pred_check
    _
  $region27: #{bottleneck_forward.6} parent=0 // pred_check_branch
    %279 = sbr.rel (0) target = $region29
  $region28: #{bottleneck_forward.6} parent=0 // pred_region
    _
  $region29: #{bottleneck_forward.6} parent=0 // pred_fallthru
    _
  // Predicated region
  $region30: #{bottleneck_forward.6} parent=0 // pred_check
    _
  $region31: #{bottleneck_forward.6} parent=0 // pred_check_branch
    %281 = sbr.rel (0) target = $region33
  $region32: #{bottleneck_forward.6} parent=0 // pred_region
    _
  $region33: #{bottleneck_forward.6} parent=0 // pred_fallthru
    _
  // Predicated region
  $region34: #{bottleneck_forward.6} parent=0 // pred_check
    _
  $region35: #{bottleneck_forward.6} parent=0 // pred_check_branch
    %283 = sbr.rel (0) target = $region37
  $region36: #{bottleneck_forward.6} parent=0 // pred_region
    _
  $region37: #{bottleneck_forward.6} parent=0 // pred_fallthru
    _
  // Predicated region
  $region38: #{bottleneck_forward.6} parent=0 // pred_check
    _
  $region39: #{bottleneck_forward.6} parent=0 // pred_check_branch
    %285 = sbr.rel (0) target = $region41
  $region40: #{bottleneck_forward.6} parent=0 // pred_region
    _
  $region41: #{bottleneck_forward.6} parent=0 // pred_fallthru
    _

// kernel: bottleneck_forward.7
$region0: #{bottleneck_forward.7}
  #allocation0 [shape = 'u32[]', space=smem, size = 0x4, offset = 0x4, fixed_abs, tag = 'smem constant byte address 0x4 - core index']
  #allocation1 [shape = 'u32[72,128]{1,0:T(1,128)}', space=vmem, size = 0x9000, scoped, tag = 'internal scratch']
  %s0 = inlined_call_operand.vmem [shape: f32[128,128], index: 0, kind: input, shape index: {}]
  %s1 = inlined_call_operand.vmem [shape: f32[1,128], index: 1, kind: input, shape index: {}]
  %s2 = inlined_call_operand.vmem [shape: f32[1,128], index: 2, kind: input, shape index: {}]
  %s3 = inlined_call_operand.vmem [shape: f32[128,128], index: 3, kind: output, shape index: {}]
  %s4 = sld [smem:[#allocation0]]
  $region22: #{bottleneck_forward.7} parent=0
    _
  %s6 = ssub.s32 1, %s4
  %s7 = scalar_select 0, %s6, %s4
  // Predicated region
  $region2: #{bottleneck_forward.7} parent=0 // pred_check
    _
  $region3: #{bottleneck_forward.7} parent=0 // pred_check_branch
    %9 = sbr.rel (0) target = $region5
  $region4: #{bottleneck_forward.7} parent=0 // pred_region
    _
  $region5: #{bottleneck_forward.7} parent=0 // pred_fallthru
    _
  // Predicated region
  $region6: #{bottleneck_forward.7} parent=0 // pred_check
    _
  $region7: #{bottleneck_forward.7} parent=0 // pred_check_branch
    %11 = sbr.rel (0) target = $region9
  $region8: #{bottleneck_forward.7} parent=0 // pred_region
    _
  $region9: #{bottleneck_forward.7} parent=0 // pred_fallthru
    _
  // Predicated region
  $region10: #{bottleneck_forward.7} parent=0 // pred_check
    _
  $region11: #{bottleneck_forward.7} parent=0 // pred_check_branch
    %13 = sbr.rel (0) target = $region13
  $region12: #{bottleneck_forward.7} parent=0 // pred_region
    _
  $region13: #{bottleneck_forward.7} parent=0 // pred_fallthru
    _
  %v14 = vld [vmem:[%s0] sm:$0xff]
  %v15 = vld [vmem:[%s0 + $0x8] sm:$0xff]
  %v16 = vld [vmem:[%s0 + $0x10] sm:$0xff]
  %v17 = vld [vmem:[%s0 + $0x18] sm:$0xff]
  %v18 = vld [vmem:[%s0 + $0x20] sm:$0xff]
  %v19 = vld [vmem:[%s0 + $0x28] sm:$0xff]
  %v20 = vld [vmem:[%s0 + $0x30] sm:$0xff]
  %v21 = vld [vmem:[%s0 + $0x38] sm:$0xff]
  %v22 = vld [vmem:[%s0 + $0x40] sm:$0xff]
  %v23 = vld [vmem:[%s0 + $0x48] sm:$0xff]
  %v24 = vld [vmem:[%s0 + $0x50] sm:$0xff]
  %v25 = vld [vmem:[%s0 + $0x58] sm:$0xff]
  %v26 = vld [vmem:[%s0 + $0x60] sm:$0xff]
  %v27 = vld [vmem:[%s0 + $0x68] sm:$0xff]
  %v28 = vld [vmem:[%s0 + $0x70] sm:$0xff]
  %v29 = vld [vmem:[%s0 + $0x78] sm:$0xff]
  %v30 = vld [vmem:[%s1] sm:$0x1]
  %v32 = vperm.slane %v30, 0
  %v34 = vmul.f32 %v14, %v32
  %v35 = vmul.f32 %v15, %v32
  %v36 = vmul.f32 %v16, %v32
  %v37 = vmul.f32 %v17, %v32
  %v38 = vmul.f32 %v18, %v32
  %v39 = vmul.f32 %v19, %v32
  %v40 = vmul.f32 %v20, %v32
  %v41 = vmul.f32 %v21, %v32
  %v42 = vmul.f32 %v22, %v32
  %v43 = vmul.f32 %v23, %v32
  %v44 = vmul.f32 %v24, %v32
  %v45 = vmul.f32 %v25, %v32
  %v46 = vmul.f32 %v26, %v32
  %v47 = vmul.f32 %v27, %v32
  %v48 = vmul.f32 %v28, %v32
  %v49 = vmul.f32 %v29, %v32
  %v50 = vld [vmem:[%s2] sm:$0x1]
  %v52 = vperm.slane %v50, 0
  %v54 = vadd.f32 %v34, %v52
  %v55 = vadd.f32 %v35, %v52
  %v56 = vadd.f32 %v36, %v52
  %v57 = vadd.f32 %v37, %v52
  %v58 = vadd.f32 %v38, %v52
  %v59 = vadd.f32 %v39, %v52
  %v60 = vadd.f32 %v40, %v52
  %v61 = vadd.f32 %v41, %v52
  %v62 = vadd.f32 %v42, %v52
  %v63 = vadd.f32 %v43, %v52
  %v64 = vadd.f32 %v44, %v52
  %v65 = vadd.f32 %v45, %v52
  %v66 = vadd.f32 %v46, %v52
  %v67 = vadd.f32 %v47, %v52
  %v68 = vadd.f32 %v48, %v52
  %v69 = vadd.f32 %v49, %v52
  %v70 = vmax.f32 %v54, 0.0
  %v71 = vmax.f32 %v55, 0.0
  %v72 = vmax.f32 %v56, 0.0
  %v73 = vmax.f32 %v57, 0.0
  %v74 = vmax.f32 %v58, 0.0
  %v75 = vmax.f32 %v59, 0.0
  %v76 = vmax.f32 %v60, 0.0
  %v77 = vmax.f32 %v61, 0.0
  %v78 = vmax.f32 %v62, 0.0
  %v79 = vmax.f32 %v63, 0.0
  %v80 = vmax.f32 %v64, 0.0
  %v81 = vmax.f32 %v65, 0.0
  %v82 = vmax.f32 %v66, 0.0
  %v83 = vmax.f32 %v67, 0.0
  %v84 = vmax.f32 %v68, 0.0
  %v85 = vmax.f32 %v69, 0.0
  %86 = vst [vmem:[%s3] sm:$0xff] %v70
  %87 = vst [vmem:[%s3 + $0x8] sm:$0xff] %v71
  %88 = vst [vmem:[%s3 + $0x10] sm:$0xff] %v72
  %89 = vst [vmem:[%s3 + $0x18] sm:$0xff] %v73
  %90 = vst [vmem:[%s3 + $0x20] sm:$0xff] %v74
  %91 = vst [vmem:[%s3 + $0x28] sm:$0xff] %v75
  %92 = vst [vmem:[%s3 + $0x30] sm:$0xff] %v76
  %93 = vst [vmem:[%s3 + $0x38] sm:$0xff] %v77
  %94 = vst [vmem:[%s3 + $0x40] sm:$0xff] %v78
  %95 = vst [vmem:[%s3 + $0x48] sm:$0xff] %v79
  %96 = vst [vmem:[%s3 + $0x50] sm:$0xff] %v80
  %97 = vst [vmem:[%s3 + $0x58] sm:$0xff] %v81
  %98 = vst [vmem:[%s3 + $0x60] sm:$0xff] %v82
  %99 = vst [vmem:[%s3 + $0x68] sm:$0xff] %v83
  %100 = vst [vmem:[%s3 + $0x70] sm:$0xff] %v84
  %101 = vst [vmem:[%s3 + $0x78] sm:$0xff] %v85
  // Predicated region
  $region14: #{bottleneck_forward.7} parent=0 // pred_check
    _
  $region15: #{bottleneck_forward.7} parent=0 // pred_check_branch
    %103 = sbr.rel (0) target = $region17
  $region16: #{bottleneck_forward.7} parent=0 // pred_region
    _
  $region17: #{bottleneck_forward.7} parent=0 // pred_fallthru
    _
  // Predicated region
  $region18: #{bottleneck_forward.7} parent=0 // pred_check
    _
  $region19: #{bottleneck_forward.7} parent=0 // pred_check_branch
    %105 = sbr.rel (0) target = $region21
  $region20: #{bottleneck_forward.7} parent=0 // pred_region
    _
  $region21: #{bottleneck_forward.7} parent=0 // pred_fallthru
    _

// kernel: bottleneck_forward.11
$region0: #{bottleneck_forward.11}
  #allocation0 [shape = 'u32[]', space=smem, size = 0x4, offset = 0x4, fixed_abs, tag = 'smem constant byte address 0x4 - core index']
  #allocation1 [shape = 'u32[72,128]{1,0:T(1,128)}', space=vmem, size = 0x9000, scoped, tag = 'internal scratch']
  %s0 = inlined_call_operand.vmem [shape: f32[128,128], index: 0, kind: input, shape index: {}]
  %s1 = inlined_call_operand.vmem [shape: f32[1,128], index: 1, kind: input, shape index: {}]
  %s2 = inlined_call_operand.vmem [shape: f32[1,128], index: 2, kind: input, shape index: {}]
  %s3 = inlined_call_operand.vmem [shape: f32[128,128], index: 3, kind: input, shape index: {}]
  %s4 = inlined_call_operand.hbm [shape: f32[128,128], index: 4, kind: output, shape index: {}]
  %s5 = sld [smem:[#allocation0]]
  $region26: #{bottleneck_forward.11} parent=0
    _
  %s7 = ssub.s32 1, %s5
  %s8 = scalar_select 0, %s7, %s5
  $region1: #{bottleneck_forward.11} parent=0
    #allocation2 [shape = 'u8[65536]{0}', space=vmem, size = 0x10000, scoped, tag = 'output window, operand 0, single buffered']
    #allocation3 [shape = 's32[1]{0}', space=sflag, size = 0x4, scoped, tag = 'scoped memory for bottleneck_forward.11']
    %9 = vsyncpa [#allocation3], 0
    // Predicated region
    $region2: #{bottleneck_forward.11} parent=1 // pred_check
      _
    $region3: #{bottleneck_forward.11} parent=1 // pred_check_branch
      %11 = sbr.rel (0) target = $region5
    $region4: #{bottleneck_forward.11} parent=1 // pred_region
      _
    $region5: #{bottleneck_forward.11} parent=1 // pred_fallthru
      _
    // Predicated region
    $region6: #{bottleneck_forward.11} parent=1 // pred_check
      _
    $region7: #{bottleneck_forward.11} parent=1 // pred_check_branch
      %13 = sbr.rel (0) target = $region9
    $region8: #{bottleneck_forward.11} parent=1 // pred_region
      _
    $region9: #{bottleneck_forward.11} parent=1 // pred_fallthru
      _
    // Predicated region
    $region10: #{bottleneck_forward.11} parent=1 // pred_check
      _
    $region11: #{bottleneck_forward.11} parent=1 // pred_check_branch
      %15 = sbr.rel (0) target = $region13
    $region12: #{bottleneck_forward.11} parent=1 // pred_region
      _
    $region13: #{bottleneck_forward.11} parent=1 // pred_fallthru
      _
    // Predicated region
    $region14: #{bottleneck_forward.11} parent=1 // pred_check
      _
    $region15: #{bottleneck_forward.11} parent=1 // pred_check_branch
      %17 = sbr.rel (0) target = $region17
    $region16: #{bottleneck_forward.11} parent=1 // pred_region
      _
    $region17: #{bottleneck_forward.11} parent=1 // pred_fallthru
      _
    %v18 = vld [vmem:[%s0] sm:$0xff]
    %v19 = vld [vmem:[%s0 + $0x8] sm:$0xff]
    %v20 = vld [vmem:[%s0 + $0x10] sm:$0xff]
    %v21 = vld [vmem:[%s0 + $0x18] sm:$0xff]
    %v22 = vld [vmem:[%s0 + $0x20] sm:$0xff]
    %v23 = vld [vmem:[%s0 + $0x28] sm:$0xff]
    %v24 = vld [vmem:[%s0 + $0x30] sm:$0xff]
    %v25 = vld [vmem:[%s0 + $0x38] sm:$0xff]
    %v26 = vld [vmem:[%s0 + $0x40] sm:$0xff]
    %v27 = vld [vmem:[%s0 + $0x48] sm:$0xff]
    %v28 = vld [vmem:[%s0 + $0x50] sm:$0xff]
    %v29 = vld [vmem:[%s0 + $0x58] sm:$0xff]
    %v30 = vld [vmem:[%s0 + $0x60] sm:$0xff]
    %v31 = vld [vmem:[%s0 + $0x68] sm:$0xff]
    %v32 = vld [vmem:[%s0 + $0x70] sm:$0xff]
    %v33 = vld [vmem:[%s0 + $0x78] sm:$0xff]
    %v34 = vld [vmem:[%s1] sm:$0x1]
    %v36 = vperm.slane %v34, 0
    %v38 = vmul.f32 %v18, %v36
    %v39 = vmul.f32 %v19, %v36
    %v40 = vmul.f32 %v20, %v36
    %v41 = vmul.f32 %v21, %v36
    %v42 = vmul.f32 %v22, %v36
    %v43 = vmul.f32 %v23, %v36
    %v44 = vmul.f32 %v24, %v36
    %v45 = vmul.f32 %v25, %v36
    %v46 = vmul.f32 %v26, %v36
    %v47 = vmul.f32 %v27, %v36
    %v48 = vmul.f32 %v28, %v36
    %v49 = vmul.f32 %v29, %v36
    %v50 = vmul.f32 %v30, %v36
    %v51 = vmul.f32 %v31, %v36
    %v52 = vmul.f32 %v32, %v36
    %v53 = vmul.f32 %v33, %v36
    %v54 = vld [vmem:[%s2] sm:$0x1]
    %v56 = vperm.slane %v54, 0
    %v58 = vadd.f32 %v38, %v56
    %v59 = vadd.f32 %v39, %v56
    %v60 = vadd.f32 %v40, %v56
    %v61 = vadd.f32 %v41, %v56
    %v62 = vadd.f32 %v42, %v56
    %v63 = vadd.f32 %v43, %v56
    %v64 = vadd.f32 %v44, %v56
    %v65 = vadd.f32 %v45, %v56
    %v66 = vadd.f32 %v46, %v56
    %v67 = vadd.f32 %v47, %v56
    %v68 = vadd.f32 %v48, %v56
    %v69 = vadd.f32 %v49, %v56
    %v70 = vadd.f32 %v50, %v56
    %v71 = vadd.f32 %v51, %v56
    %v72 = vadd.f32 %v52, %v56
    %v73 = vadd.f32 %v53, %v56
    %v74 = vld [vmem:[%s3] sm:$0xff]
    %v75 = vld [vmem:[%s3 + $0x8] sm:$0xff]
    %v76 = vld [vmem:[%s3 + $0x10] sm:$0xff]
    %v77 = vld [vmem:[%s3 + $0x18] sm:$0xff]
    %v78 = vld [vmem:[%s3 + $0x20] sm:$0xff]
    %v79 = vld [vmem:[%s3 + $0x28] sm:$0xff]
    %v80 = vld [vmem:[%s3 + $0x30] sm:$0xff]
    %v81 = vld [vmem:[%s3 + $0x38] sm:$0xff]
    %v82 = vld [vmem:[%s3 + $0x40] sm:$0xff]
    %v83 = vld [vmem:[%s3 + $0x48] sm:$0xff]
    %v84 = vld [vmem:[%s3 + $0x50] sm:$0xff]
    %v85 = vld [vmem:[%s3 + $0x58] sm:$0xff]
    %v86 = vld [vmem:[%s3 + $0x60] sm:$0xff]
    %v87 = vld [vmem:[%s3 + $0x68] sm:$0xff]
    %v88 = vld [vmem:[%s3 + $0x70] sm:$0xff]
    %v89 = vld [vmem:[%s3 + $0x78] sm:$0xff]
    %v90 = vadd.f32 %v58, %v74
    %v91 = vadd.f32 %v59, %v75
    %v92 = vadd.f32 %v60, %v76
    %v93 = vadd.f32 %v61, %v77
    %v94 = vadd.f32 %v62, %v78
    %v95 = vadd.f32 %v63, %v79
    %v96 = vadd.f32 %v64, %v80
    %v97 = vadd.f32 %v65, %v81
    %v98 = vadd.f32 %v66, %v82
    %v99 = vadd.f32 %v67, %v83
    %v100 = vadd.f32 %v68, %v84
    %v101 = vadd.f32 %v69, %v85
    %v102 = vadd.f32 %v70, %v86
    %v103 = vadd.f32 %v71, %v87
    %v104 = vadd.f32 %v72, %v88
    %v105 = vadd.f32 %v73, %v89
    %v106 = vmax.f32 %v90, 0.0
    %v107 = vmax.f32 %v91, 0.0
    %v108 = vmax.f32 %v92, 0.0
    %v109 = vmax.f32 %v93, 0.0
    %v110 = vmax.f32 %v94, 0.0
    %v111 = vmax.f32 %v95, 0.0
    %v112 = vmax.f32 %v96, 0.0
    %v113 = vmax.f32 %v97, 0.0
    %v114 = vmax.f32 %v98, 0.0
    %v115 = vmax.f32 %v99, 0.0
    %v116 = vmax.f32 %v100, 0.0
    %v117 = vmax.f32 %v101, 0.0
    %v118 = vmax.f32 %v102, 0.0
    %v119 = vmax.f32 %v103, 0.0
    %v120 = vmax.f32 %v104, 0.0
    %v121 = vmax.f32 %v105, 0.0
    %122 = vst [vmem:[#allocation2] sm:$0xff] %v106
    %123 = vst [vmem:[#allocation2 + $0x8] sm:$0xff] %v107
    %124 = vst [vmem:[#allocation2 + $0x10] sm:$0xff] %v108
    %125 = vst [vmem:[#allocation2 + $0x18] sm:$0xff] %v109
    %126 = vst [vmem:[#allocation2 + $0x20] sm:$0xff] %v110
    %127 = vst [vmem:[#allocation2 + $0x28] sm:$0xff] %v111
    %128 = vst [vmem:[#allocation2 + $0x30] sm:$0xff] %v112
    %129 = vst [vmem:[#allocation2 + $0x38] sm:$0xff] %v113
    %130 = vst [vmem:[#allocation2 + $0x40] sm:$0xff] %v114
    %131 = vst [vmem:[#allocation2 + $0x48] sm:$0xff] %v115
    %132 = vst [vmem:[#allocation2 + $0x50] sm:$0xff] %v116
    %133 = vst [vmem:[#allocation2 + $0x58] sm:$0xff] %v117
    %134 = vst [vmem:[#allocation2 + $0x60] sm:$0xff] %v118
    %135 = vst [vmem:[#allocation2 + $0x68] sm:$0xff] %v119
    %136 = vst [vmem:[#allocation2 + $0x70] sm:$0xff] %v120
    %137 = vst [vmem:[#allocation2 + $0x78] sm:$0xff] %v121
    // Predicated region
    $region18: #{bottleneck_forward.11} parent=1 // pred_check
      _
    $region19: #{bottleneck_forward.11} parent=1 // pred_check_branch
      %139 = sbr.rel (0) target = $region21
    $region20: #{bottleneck_forward.11} parent=1 // pred_region
      %141 = vsyncadd [#allocation3], 0
      %s142 = sshll.u32 [#allocation2], 4
      %s143 = int_to_ptr.vmem [resolvable:$true] %s142
      %s144 = sshll.u32 %s4, 4
      %s145 = int_to_ptr.hbm [resolvable:$true] %s144
      %150 = dma.vmem_to_hbm [thread:$0]  %s143, 2048, %s145, [#allocation3], 128, 128, 8
    $region21: #{bottleneck_forward.11} parent=1 // pred_fallthru
      _
    // Predicated region
    $region22: #{bottleneck_forward.11} parent=1 // pred_check
      _
    $region23: #{bottleneck_forward.11} parent=1 // pred_check_branch
      %152 = sbr.rel (0) target = $region25
    $region24: #{bottleneck_forward.11} parent=1 // pred_region
      %154 = dma.done [#allocation3], 2048
    $region25: #{bottleneck_forward.11} parent=1 // pred_fallthru
      _
    %155 = vsyncpa [#allocation3], 1

// kernel: bottleneck_forward.8
$region0: #{bottleneck_forward.8}
  #allocation0 [shape = 'u32[]', space=smem, size = 0x4, offset = 0x4, fixed_abs, tag = 'smem constant byte address 0x4 - core index']
  #allocation1 [shape = 'u32[72,128]{1,0:T(1,128)}', space=vmem, size = 0x9000, scoped, tag = 'internal scratch']
  #allocation2 [shape = 'f32[128,128]{1,0:T(8,128)}', space=vmem, size = 0x10000, scoped, tag = 'scratch operand']
  %s0 = inlined_call_operand.vmem [shape: f32[128,1152], index: 0, kind: input, shape index: {}]
  %s1 = inlined_call_operand.vmem [shape: f32[1152,128], index: 1, kind: input, shape index: {}]
  %s2 = inlined_call_operand.vmem [shape: f32[128,128], index: 2, kind: output, shape index: {0}]
  %s3 = inlined_call_operand.vmem [shape: f32[8,128], index: 3, kind: output, shape index: {1}]
  %s4 = inlined_call_operand.vmem [shape: f32[8,128], index: 4, kind: output, shape index: {2}]
  %5 = xla_tuple %s2, %s3, %s4
  %s6 = sld [smem:[#allocation0]]
  $region88: #{bottleneck_forward.8} parent=0
    _
  %s8 = ssub.s32 1, %s6
  %s9 = scalar_select 0, %s8, %s6
  $region1: #{bottleneck_forward.8} parent=0
    #allocation3 [shape = 'u8[393216]{0}', space=vmem, size = 0x60000, scoped, tag = 'input window, operand 0']
    loop: start=0, step=1, limit=5
    $region2: #{bottleneck_forward.8} parent=1 // loop_pre_header
      _
    $region3: #{bottleneck_forward.8} parent=1 // loop_header
      %s11 = sphi 0, %s15
      %p12 = scmp.ge.s32.totalorder %s11, 5
      %s18 = sphi 0, %s37
      %s19 = sphi 0, %s33
      %s20 = sphi 0, %s29
      %s21 = sphi 0, %s18
      %s22 = sphi 0, %s19
      %s23 = sphi 0, %s20
      %s24 = sphi 0, %s21
      %s25 = sphi 0, %s22
      %s26 = sphi 0, %s23
      %s42 = sphi 0, %s44
      %s45 = sphi 0, %s42
      %s46 = sphi 0, %s45
      %s62 = sphi 0, %s46
      %s70 = sphi 0, %s72
      %s73 = sphi 0, %s70
      %s74 = sphi 0, %s73
      %s90 = sphi 0, %s74
      %s98 = sphi 0, %s100
      %s101 = sphi 0, %s98
      %s102 = sphi 0, %s101
      %s118 = sphi 0, %s102
      %s126 = sphi 0, %s128
      %s129 = sphi 0, %s126
      %s130 = sphi 0, %s129
      %s146 = sphi 0, %s130
      %s154 = sphi 0, %s156
      %s157 = sphi 0, %s154
      %s158 = sphi 0, %s157
      %s174 = sphi 0, %s158
    $region4: #{bottleneck_forward.8} parent=1 // loop_header_branch
      %14 = sbr.rel (%p12) target = $region8
    $region5: #{bottleneck_forward.8} parent=1 // loop_body
      %s16 = ssub.s32 %s11, 1
      %s17 = ssub.s32 %s11, 2
      %s27 = sadd.s32 1, %s20
      %p28 = scmp.ge.s32.totalorder %s27, 3
      %s29 = scalar_select %p28, 0, %s27
      %s30 = sadd.s32 1, %s19
      %s31 = scalar_select %p28, %s30, %s19
      %p32 = scmp.ge.s32.totalorder %s31, 1
      %s33 = scalar_select %p32, 0, %s31
      %s34 = sadd.s32 1, %s18
      %s35 = scalar_select %p32, %s34, %s18
      %p36 = scmp.ge.s32.totalorder %s35, 1
      %s37 = scalar_select %p36, 0, %s35
      %s38 = ssub.s32 %s18, %s37
      %s39 = ssub.s32 %s20, %s29
      %s40 = sor.u32 %s38, %s39
      %p41 = scmp.eq.s32.totalorder %s40, 0
      %s43 = sadd.s32 %s42, 1
      %s44 = scalar_select %p41, %s42, %s43
      %p47 = pneg %p41
      %p48 = scmp.eq.s32.totalorder %s11, 2
      %p49 = por %p47, %p48
      %p50 = scmp.ne.s32.totalorder %s42, %s45
      %p51 = scmp.eq.s32.totalorder %s11, 0
      %p52 = por %p50, %p51
      %p53 = scmp.ne.s32.totalorder %s42, %s45
      %p54 = scmp.eq.s32.totalorder %s16, 2
      %p55 = por %p53, %p54
      %p56 = scmp.ne.s32.totalorder %s45, %s46
      %p57 = scmp.eq.s32.totalorder %s16, 0
      %p58 = por %p56, %p57
      %p59 = scmp.ne.s32.totalorder %s45, %s46
      %p60 = scmp.eq.s32.totalorder %s17, 2
      %p61 = por %p59, %p60
      %p63 = scmp.ne.s32.totalorder %s46, %s62
      %p64 = scmp.eq.s32.totalorder %s17, 0
      %p65 = por %p63, %p64
      %s66 = ssub.s32 %s20, %s29
      %s67 = ssub.s32 %s19, %s33
      %s68 = sor.u32 %s66, %s67
      %p69 = scmp.eq.s32.totalorder %s68, 0
      %s71 = sadd.s32 %s70, 1
      %s72 = scalar_select %p69, %s70, %s71
      %p75 = pneg %p69
      %p76 = scmp.eq.s32.totalorder %s11, 2
      %p77 = por %p75, %p76
      %p78 = scmp.ne.s32.totalorder %s70, %s73
      %p79 = scmp.eq.s32.totalorder %s11, 0
      %p80 = por %p78, %p79
      %p81 = scmp.ne.s32.totalorder %s70, %s73
      %p82 = scmp.eq.s32.totalorder %s16, 2
      %p83 = por %p81, %p82
      %p84 = scmp.ne.s32.totalorder %s73, %s74
      %p85 = scmp.eq.s32.totalorder %s16, 0
      %p86 = por %p84, %p85
      %p87 = scmp.ne.s32.totalorder %s73, %s74
      %p88 = scmp.eq.s32.totalorder %s17, 2
      %p89 = por %p87, %p88
      %p91 = scmp.ne.s32.totalorder %s74, %s90
      %p92 = scmp.eq.s32.totalorder %s17, 0
      %p93 = por %p91, %p92
      %s94 = ssub.s32 %s18, %s37
      %s95 = ssub.s32 %s19, %s33
      %s96 = sor.u32 %s94, %s95
      %p97 = scmp.eq.s32.totalorder %s96, 0
      %s99 = sadd.s32 %s98, 1
      %s100 = scalar_select %p97, %s98, %s99
      %p103 = pneg %p97
      %p104 = scmp.eq.s32.totalorder %s11, 2
      %p105 = por %p103, %p104
      %p106 = scmp.ne.s32.totalorder %s98, %s101
      %p107 = scmp.eq.s32.totalorder %s11, 0
      %p108 = por %p106, %p107
      %p109 = scmp.ne.s32.totalorder %s98, %s101
      %p110 = scmp.eq.s32.totalorder %s16, 2
      %p111 = por %p109, %p110
      %p112 = scmp.ne.s32.totalorder %s101, %s102
      %p113 = scmp.eq.s32.totalorder %s16, 0
      %p114 = por %p112, %p113
      %p115 = scmp.ne.s32.totalorder %s101, %s102
      %p116 = scmp.eq.s32.totalorder %s17, 2
      %p117 = por %p115, %p116
      %p119 = scmp.ne.s32.totalorder %s102, %s118
      %p120 = scmp.eq.s32.totalorder %s17, 0
      %p121 = por %p119, %p120
      %s122 = ssub.s32 %s18, %s37
      %s123 = ssub.s32 %s19, %s33
      %s124 = sor.u32 %s122, %s123
      %p125 = scmp.eq.s32.totalorder %s124, 0
      %s127 = sadd.s32 %s126, 1
      %s128 = scalar_select %p125, %s126, %s127
      %p131 = pneg %p125
      %p132 = scmp.eq.s32.totalorder %s11, 2
      %p133 = por %p131, %p132
      %p134 = scmp.ne.s32.totalorder %s126, %s129
      %p135 = scmp.eq.s32.totalorder %s11, 0
      %p136 = por %p134, %p135
      %p137 = scmp.ne.s32.totalorder %s126, %s129
      %p138 = scmp.eq.s32.totalorder %s16, 2
      %p139 = por %p137, %p138
      %p140 = scmp.ne.s32.totalorder %s129, %s130
      %p141 = scmp.eq.s32.totalorder %s16, 0
      %p142 = por %p140, %p141
      %p143 = scmp.ne.s32.totalorder %s129, %s130
      %p144 = scmp.eq.s32.totalorder %s17, 2
      %p145 = por %p143, %p144
      %p147 = scmp.ne.s32.totalorder %s130, %s146
      %p148 = scmp.eq.s32.totalorder %s17, 0
      %p149 = por %p147, %p148
      %s150 = ssub.s32 %s18, %s37
      %s151 = ssub.s32 %s19, %s33
      %s152 = sor.u32 %s150, %s151
      %p153 = scmp.eq.s32.totalorder %s152, 0
      %s155 = sadd.s32 %s154, 1
      %s156 = scalar_select %p153, %s154, %s155
      %p159 = pneg %p153
      %p160 = scmp.eq.s32.totalorder %s11, 2
      %p161 = por %p159, %p160
      %p162 = scmp.ne.s32.totalorder %s154, %s157
      %p163 = scmp.eq.s32.totalorder %s11, 0
      %p164 = por %p162, %p163
      %p165 = scmp.ne.s32.totalorder %s154, %s157
      %p166 = scmp.eq.s32.totalorder %s16, 2
      %p167 = por %p165, %p166
      %p168 = scmp.ne.s32.totalorder %s157, %s158
      %p169 = scmp.eq.s32.totalorder %s16, 0
      %p170 = por %p168, %p169
      %p171 = scmp.ne.s32.totalorder %s157, %s158
      %p172 = scmp.eq.s32.totalorder %s17, 2
      %p173 = por %p171, %p172
      %p175 = scmp.ne.s32.totalorder %s158, %s174
      %p176 = scmp.eq.s32.totalorder %s17, 0
      %p177 = por %p175, %p176
      %p178 = scmp.le.s32.totalorder 1, %s11
      %p179 = scmp.lt.s32.totalorder %s11, 4
      %p180 = pnand %p178, %p179
      %p181 = pneg %p180
      // Predicated region
      $region9: #{bottleneck_forward.8} parent=5 // pred_check
        _
      $region10: #{bottleneck_forward.8} parent=5 // pred_check_branch
        %183 = sbr.rel (%p180) target = $region12
      $region11: #{bottleneck_forward.8} parent=5 // pred_region
        %s184 = ssub.s32 %s11, 1
      $region12: #{bottleneck_forward.8} parent=5 // pred_fallthru
        _
      %p185 = scmp.lt.s32.totalorder %s11, 3
      // Predicated region
      $region13: #{bottleneck_forward.8} parent=5 // pred_check
        %p186 = pneg %p185
      $region14: #{bottleneck_forward.8} parent=5 // pred_check_branch
        %188 = sbr.rel (%p186) target = $region16
      $region15: #{bottleneck_forward.8} parent=5 // pred_region
        // Predicated region
        $region17: #{bottleneck_forward.8} parent=15 // pred_check
          %p189 = pneg %p52
        $region18: #{bottleneck_forward.8} parent=15 // pred_check_branch
          %191 = sbr.rel (%p189) target = $region20
        $region19: #{bottleneck_forward.8} parent=15 // pred_region
          %s192 = sand.u32 %s42, 1
          %s193 = sand.u32 %s42, 1
          %s194 = smul.addr %s193, 384
          %s195 = scalar_lea.vmem [#allocation3], %s194
          %s196 = smul.u32 16, %s18
          %s197 = smul.u32 3, %s20
          %s198 = smul.addr %s196, 9
          %s199 = sadd.s32 %s197, %s198
          %s200 = smul.addr %s199, 8
          %s201 = scalar_lea.vmem %s0, %s200
          // Predicated region
          $region21: #{bottleneck_forward.8} parent=19 // pred_check
            _
          $region22: #{bottleneck_forward.8} parent=19 // pred_check_branch
            %203 = sbr.rel (0) target = $region24
          $region23: #{bottleneck_forward.8} parent=19 // pred_region
            // Predicated region
            $region25: #{bottleneck_forward.8} parent=23 // pred_check
              _
            $region26: #{bottleneck_forward.8} parent=23 // pred_check_branch
              %205 = sbr.rel (0) target = $region28
            $region27: #{bottleneck_forward.8} parent=23 // pred_region
              loop: start=0, step=1, limit=1
              $region29: #{bottleneck_forward.8} parent=27 // loop_pre_header
                _
              $region30: #{bottleneck_forward.8} parent=27 // loop_header
                %s207 = sphi 0, %s211
                %p208 = scmp.ge.s32.totalorder %s207, 1
                %s212 = sphi %s201, %s201
                %s213 = sphi %s195, %s195
              $region31: #{bottleneck_forward.8} parent=27 // loop_header_branch
                %210 = sbr.rel (%p208) target = $region35
              $region32: #{bottleneck_forward.8} parent=27 // loop_body
                %v214 = vld [vmem:[%s212] sm:$0xff]
                %215 = vst [vmem:[%s213] sm:$0xff] %v214
                %v216 = vld [vmem:[%s212 + $0x8] sm:$0xff]
                %217 = vst [vmem:[%s213 + $0x8] sm:$0xff] %v216
                %v218 = vld [vmem:[%s212 + $0x10] sm:$0xff]
                %219 = vst [vmem:[%s213 + $0x10] sm:$0xff] %v218
                %v220 = vld [vmem:[%s212 + $0x48] sm:$0xff]
                %221 = vst [vmem:[%s213 + $0x18] sm:$0xff] %v220
                %v222 = vld [vmem:[%s212 + $0x50] sm:$0xff]
                %223 = vst [vmem:[%s213 + $0x20] sm:$0xff] %v222
                %v224 = vld [vmem:[%s212 + $0x58] sm:$0xff]
                %225 = vst [vmem:[%s213 + $0x28] sm:$0xff] %v224
                %v226 = vld [vmem:[%s212 + $0x90] sm:$0xff]
                %227 = vst [vmem:[%s213 + $0x30] sm:$0xff] %v226
                %v228 = vld [vmem:[%s212 + $0x98] sm:$0xff]
                %229 = vst [vmem:[%s213 + $0x38] sm:$0xff] %v228
                %v230 = vld [vmem:[%s212 + $0xa0] sm:$0xff]
                %231 = vst [vmem:[%s213 + $0x40] sm:$0xff] %v230
                %v232 = vld [vmem:[%s212 + $0xd8] sm:$0xff]
                %233 = vst [vmem:[%s213 + $0x48] sm:$0xff] %v232
                %v234 = vld [vmem:[%s212 + $0xe0] sm:$0xff]
                %235 = vst [vmem:[%s213 + $0x50] sm:$0xff] %v234
                %v236 = vld [vmem:[%s212 + $0xe8] sm:$0xff]
                %237 = vst [vmem:[%s213 + $0x58] sm:$0xff] %v236
                %v238 = vld [vmem:[%s212 + $0x120] sm:$0xff]
                %239 = vst [vmem:[%s213 + $0x60] sm:$0xff] %v238
                %v240 = vld [vmem:[%s212 + $0x128] sm:$0xff]
                %241 = vst [vmem:[%s213 + $0x68] sm:$0xff] %v240
                %v242 = vld [vmem:[%s212 + $0x130] sm:$0xff]
                %243 = vst [vmem:[%s213 + $0x70] sm:$0xff] %v242
                %v244 = vld [vmem:[%s212 + $0x168] sm:$0xff]
                %245 = vst [vmem:[%s213 + $0x78] sm:$0xff] %v244
                %v246 = vld [vmem:[%s212 + $0x170] sm:$0xff]
                %247 = vst [vmem:[%s213 + $0x80] sm:$0xff] %v246
                %v248 = vld [vmem:[%s212 + $0x178] sm:$0xff]
                %249 = vst [vmem:[%s213 + $0x88] sm:$0xff] %v248
                %v250 = vld [vmem:[%s212 + $0x1b0] sm:$0xff]
                %251 = vst [vmem:[%s213 + $0x90] sm:$0xff] %v250
                %v252 = vld [vmem:[%s212 + $0x1b8] sm:$0xff]
                %253 = vst [vmem:[%s213 + $0x98] sm:$0xff] %v252
                %v254 = vld [vmem:[%s212 + $0x1c0] sm:$0xff]
                %255 = vst [vmem:[%s213 + $0xa0] sm:$0xff] %v254
                %v256 = vld [vmem:[%s212 + $0x1f8] sm:$0xff]
                %257 = vst [vmem:[%s213 + $0xa8] sm:$0xff] %v256
                %v258 = vld [vmem:[%s212 + $0x200] sm:$0xff]
                %259 = vst [vmem:[%s213 + $0xb0] sm:$0xff] %v258
                %v260 = vld [vmem:[%s212 + $0x208] sm:$0xff]
                %261 = vst [vmem:[%s213 + $0xb8] sm:$0xff] %v260
                %v262 = vld [vmem:[%s212 + $0x240] sm:$0xff]
                %263 = vst [vmem:[%s213 + $0xc0] sm:$0xff] %v262
                %v264 = vld [vmem:[%s212 + $0x248] sm:$0xff]
                %265 = vst [vmem:[%s213 + $0xc8] sm:$0xff] %v264
                %v266 = vld [vmem:[%s212 + $0x250] sm:$0xff]
                %267 = vst [vmem:[%s213 + $0xd0] sm:$0xff] %v266
                %v268 = vld [vmem:[%s212 + $0x288] sm:$0xff]
                %269 = vst [vmem:[%s213 + $0xd8] sm:$0xff] %v268
                %v270 = vld [vmem:[%s212 + $0x290] sm:$0xff]
                %271 = vst [vmem:[%s213 + $0xe0] sm:$0xff] %v270
                %v272 = vld [vmem:[%s212 + $0x298] sm:$0xff]
                %273 = vst [vmem:[%s213 + $0xe8] sm:$0xff] %v272
                %v274 = vld [vmem:[%s212 + $0x2d0] sm:$0xff]
                %275 = vst [vmem:[%s213 + $0xf0] sm:$0xff] %v274
                %v276 = vld [vmem:[%s212 + $0x2d8] sm:$0xff]
                %277 = vst [vmem:[%s213 + $0xf8] sm:$0xff] %v276
                %v278 = vld [vmem:[%s212 + $0x2e0] sm:$0xff]
                %279 = vst [vmem:[%s213 + $0x100] sm:$0xff] %v278
                %v280 = vld [vmem:[%s212 + $0x318] sm:$0xff]
                %281 = vst [vmem:[%s213 + $0x108] sm:$0xff] %v280
                %v282 = vld [vmem:[%s212 + $0x320] sm:$0xff]
                %283 = vst [vmem:[%s213 + $0x110] sm:$0xff] %v282
                %v284 = vld [vmem:[%s212 + $0x328] sm:$0xff]
                %285 = vst [vmem:[%s213 + $0x118] sm:$0xff] %v284
                %v286 = vld [vmem:[%s212 + $0x360] sm:$0xff]
                %287 = vst [vmem:[%s213 + $0x120] sm:$0xff] %v286
                %v288 = vld [vmem:[%s212 + $0x368] sm:$0xff]
                %289 = vst [vmem:[%s213 + $0x128] sm:$0xff] %v288
                %v290 = vld [vmem:[%s212 + $0x370] sm:$0xff]
                %291 = vst [vmem:[%s213 + $0x130] sm:$0xff] %v290
                %v292 = vld [vmem:[%s212 + $0x3a8] sm:$0xff]
                %293 = vst [vmem:[%s213 + $0x138] sm:$0xff] %v292
                %v294 = vld [vmem:[%s212 + $0x3b0] sm:$0xff]
                %295 = vst [vmem:[%s213 + $0x140] sm:$0xff] %v294
                %v296 = vld [vmem:[%s212 + $0x3b8] sm:$0xff]
                %297 = vst [vmem:[%s213 + $0x148] sm:$0xff] %v296
                %v298 = vld [vmem:[%s212 + $0x3f0] sm:$0xff]
                %299 = vst [vmem:[%s213 + $0x150] sm:$0xff] %v298
                %v300 = vld [vmem:[%s212 + $0x3f8] sm:$0xff]
                %301 = vst [vmem:[%s213 + $0x158] sm:$0xff] %v300
                %v302 = vld [vmem:[%s212 + $0x400] sm:$0xff]
                %303 = vst [vmem:[%s213 + $0x160] sm:$0xff] %v302
                %v304 = vld [vmem:[%s212 + $0x438] sm:$0xff]
                %305 = vst [vmem:[%s213 + $0x168] sm:$0xff] %v304
                %v306 = vld [vmem:[%s212 + $0x440] sm:$0xff]
                %307 = vst [vmem:[%s213 + $0x170] sm:$0xff] %v306
                %v308 = vld [vmem:[%s212 + $0x448] sm:$0xff]
                %309 = vst [vmem:[%s213 + $0x178] sm:$0xff] %v308
              $region33: #{bottleneck_forward.8} parent=27 // loop_footer
                %s211 = sadd.s32 1, %s207
              $region34: #{bottleneck_forward.8} parent=27 // loop_footer_branch
                %206 = sbr.rel target = $region30
              $region35: #{bottleneck_forward.8} parent=27 // loop_exit
                _
            $region28: #{bottleneck_forward.8} parent=23 // pred_fallthru
              _
            // Predicated region
            $region36: #{bottleneck_forward.8} parent=23 // pred_check
              _
            $region37: #{bottleneck_forward.8} parent=23 // pred_check_branch
              %311 = sbr.rel target = $region39
            $region38: #{bottleneck_forward.8} parent=23 // pred_region
              _
            $region39: #{bottleneck_forward.8} parent=23 // pred_fallthru
              _
          $region24: #{bottleneck_forward.8} parent=19 // pred_fallthru
            _
          %312 = vnop
        $region20: #{bottleneck_forward.8} parent=15 // pred_fallthru
          _
        // Predicated region
        $region40: #{bottleneck_forward.8} parent=15 // pred_check
          %p313 = pneg %p80
        $region41: #{bottleneck_forward.8} parent=15 // pred_check_branch
          %315 = sbr.rel (%p313) target = $region43
        $region42: #{bottleneck_forward.8} parent=15 // pred_region
          %s316 = smul.u32 48, %s20
          %p317 = scmp.lt.s32.totalorder %s316, 143
          %s318 = scalar_select %p317, %s316, 143
          %p319 = scmp.lt.s32.totalorder %s19, 0
          %s320 = scalar_select %p319, %s19, 0
          %s321 = sadd.s32 %s320, %s318
          %s322 = smul.addr %s321, 8
          %s323 = scalar_lea.vmem %s1, %s322
          %s324 = smul.u32 48, %s20
        $region43: #{bottleneck_forward.8} parent=15 // pred_fallthru
          _
      $region16: #{bottleneck_forward.8} parent=5 // pred_fallthru
        _
      %p325 = scmp.le.s32.totalorder 1, %s11
      %p326 = scmp.lt.s32.totalorder %s11, 4
      %p327 = pnand %p325, %p326
      %p328 = pneg %p327
      // Predicated region
      $region44: #{bottleneck_forward.8} parent=5 // pred_check
        _
      $region45: #{bottleneck_forward.8} parent=5 // pred_check_branch
        %330 = sbr.rel (%p327) target = $region47
      $region46: #{bottleneck_forward.8} parent=5 // pred_region
        %s331 = ssub.s32 %s11, 1
        %s332 = sand.u32 %s45, 1
        %s333 = sand.u32 %s45, 1
        %s334 = smul.addr %s333, 384
        %s335 = scalar_lea.vmem [#allocation3], %s334
        // Predicated region
        $region48: #{bottleneck_forward.8} parent=46 // pred_check
          %p336 = pneg %p58
        $region49: #{bottleneck_forward.8} parent=46 // pred_check_branch
          %338 = sbr.rel (%p336) target = $region51
        $region50: #{bottleneck_forward.8} parent=46 // pred_region
          _
        $region51: #{bottleneck_forward.8} parent=46 // pred_fallthru
          _
        %s339 = sand.u32 %s45, 1
        %s340 = sand.u32 %s45, 1
        %s341 = smul.addr %s340, 384
        %s342 = scalar_lea.vmem [#allocation3], %s341
        %p343 = pneg %p58
        %p344 = pneg %p55
        %s345 = smul.u32 48, %s23
        %p346 = scmp.lt.s32.totalorder %s345, 143
        %s347 = scalar_select %p346, %s345, 143
        %p348 = scmp.lt.s32.totalorder %s22, 0
        %s349 = scalar_select %p348, %s22, 0
        %s350 = sadd.s32 %s349, %s347
        %s351 = smul.addr %s350, 8
        %s352 = scalar_lea.vmem %s1, %s351
        %p353 = pneg %p86
        %p354 = pneg %p83
        %p355 = pneg %p114
        %p356 = pneg %p111
        %s357 = smul.u32 16, %s21
        %p358 = scmp.lt.s32.totalorder %s357, 15
        %s359 = scalar_select %p358, %s357, 15
        %p360 = scmp.lt.s32.totalorder %s22, 0
        %s361 = scalar_select %p360, %s22, 0
        %s362 = sadd.s32 %s361, %s359
        %s363 = smul.addr %s362, 8
        %s364 = scalar_lea.vmem %s2, %s363
        %p365 = pneg %p142
        %p366 = pneg %p139
        %p367 = scmp.lt.s32.totalorder %s21, 0
        %s368 = scalar_select %p367, %s21, 0
        %p369 = scmp.lt.s32.totalorder %s22, 0
        %s370 = scalar_select %p369, %s22, 0
        %s371 = sadd.s32 %s370, %s368
        %s372 = smul.addr %s371, 8
        %s373 = scalar_lea.vmem %s3, %s372
        %p374 = pneg %p170
        %p375 = pneg %p167
        %p376 = scmp.lt.s32.totalorder %s21, 0
        %s377 = scalar_select %p376, %s21, 0
        %p378 = scmp.lt.s32.totalorder %s22, 0
        %s379 = scalar_select %p378, %s22, 0
        %s380 = sadd.s32 %s379, %s377
        %s381 = smul.addr %s380, 8
        %s382 = scalar_lea.vmem %s4, %s381
        %s383 = smul.u32 16, %s21
        %s384 = smul.u32 3, %s23
        %s385 = smul.u32 48, %s23
        %p386 = scmp.lt.s32.totalorder %s385, 143
        %s387 = scalar_select %p386, %s385, 143
        %p388 = scmp.lt.s32.totalorder %s22, 0
        %s389 = scalar_select %p388, %s22, 0
        %s390 = sadd.s32 %s389, %s387
        %s391 = smul.addr %s390, 8
        %s392 = scalar_lea.vmem %s1, %s391
        %s393 = smul.u32 48, %s23
        %s394 = smul.u32 16, %s21
        %p395 = scmp.lt.s32.totalorder %s394, 15
        %s396 = scalar_select %p395, %s394, 15
        %p397 = scmp.lt.s32.totalorder %s22, 0
        %s398 = scalar_select %p397, %s22, 0
        %s399 = sadd.s32 %s398, %s396
        %s400 = smul.addr %s399, 8
        %s401 = scalar_lea.vmem %s2, %s400
        %s402 = smul.u32 16, %s21
        %p403 = scmp.lt.s32.totalorder %s21, 0
        %s404 = scalar_select %p403, %s21, 0
        %p405 = scmp.lt.s32.totalorder %s22, 0
        %s406 = scalar_select %p405, %s22, 0
        %s407 = sadd.s32 %s406, %s404
        %s408 = smul.addr %s407, 8
        %s409 = scalar_lea.vmem %s3, %s408
        %p410 = scmp.lt.s32.totalorder %s21, 0
        %s411 = scalar_select %p410, %s21, 0
        %p412 = scmp.lt.s32.totalorder %s22, 0
        %s413 = scalar_select %p412, %s22, 0
        %s414 = sadd.s32 %s413, %s411
        %s415 = smul.addr %s414, 8
        %s416 = scalar_lea.vmem %s4, %s415
        %p417 = scmp.eq.s32.totalorder %s23, 0
        // Predicated region
        $region52: #{bottleneck_forward.8} parent=46 // pred_check
          %p418 = pneg %p417
        $region53: #{bottleneck_forward.8} parent=46 // pred_check_branch
          %420 = sbr.rel (%p418) target = $region55
        $region54: #{bottleneck_forward.8} parent=46 // pred_region
          %421 = vst [vmem:[#allocation2] sm:$0xff] 0.0
          %422 = vst [vmem:[#allocation2 + $0x8] sm:$0xff] 0.0
          %423 = vst [vmem:[#allocation2 + $0x10] sm:$0xff] 0.0
          %424 = vst [vmem:[#allocation2 + $0x18] sm:$0xff] 0.0
          %425 = vst [vmem:[#allocation2 + $0x20] sm:$0xff] 0.0
          %426 = vst [vmem:[#allocation2 + $0x28] sm:$0xff] 0.0
          %427 = vst [vmem:[#allocation2 + $0x30] sm:$0xff] 0.0
          %428 = vst [vmem:[#allocation2 + $0x38] sm:$0xff] 0.0
          %429 = vst [vmem:[#allocation2 + $0x40] sm:$0xff] 0.0
          %430 = vst [vmem:[#allocation2 + $0x48] sm:$0xff] 0.0
          %431 = vst [vmem:[#allocation2 + $0x50] sm:$0xff] 0.0
          %432 = vst [vmem:[#allocation2 + $0x58] sm:$0xff] 0.0
          %433 = vst [vmem:[#allocation2 + $0x60] sm:$0xff] 0.0
          %434 = vst [vmem:[#allocation2 + $0x68] sm:$0xff] 0.0
          %435 = vst [vmem:[#allocation2 + $0x70] sm:$0xff] 0.0
          %436 = vst [vmem:[#allocation2 + $0x78] sm:$0xff] 0.0
        $region55: #{bottleneck_forward.8} parent=46 // pred_fallthru
          _
        %v437 = vld [vmem:[#allocation2] sm:$0xff]
        %v438 = vld [vmem:[#allocation2 + $0x8] sm:$0xff]
        %v439 = vld [vmem:[#allocation2 + $0x10] sm:$0xff]
        %v440 = vld [vmem:[#allocation2 + $0x18] sm:$0xff]
        %v441 = vld [vmem:[#allocation2 + $0x20] sm:$0xff]
        %v442 = vld [vmem:[#allocation2 + $0x28] sm:$0xff]
        %v443 = vld [vmem:[#allocation2 + $0x30] sm:$0xff]
        %v444 = vld [vmem:[#allocation2 + $0x38] sm:$0xff]
        %v445 = vld [vmem:[#allocation2 + $0x40] sm:$0xff]
        %v446 = vld [vmem:[#allocation2 + $0x48] sm:$0xff]
        %v447 = vld [vmem:[#allocation2 + $0x50] sm:$0xff]
        %v448 = vld [vmem:[#allocation2 + $0x58] sm:$0xff]
        %v449 = vld [vmem:[#allocation2 + $0x60] sm:$0xff]
        %v450 = vld [vmem:[#allocation2 + $0x68] sm:$0xff]
        %v451 = vld [vmem:[#allocation2 + $0x70] sm:$0xff]
        %v452 = vld [vmem:[#allocation2 + $0x78] sm:$0xff]
        %v453 = vld [vmem:[%s335] sm:$0xff]
        %v454 = vld [vmem:[%s335 + $0x8] sm:$0xff]
        %v455 = vld [vmem:[%s335 + $0x10] sm:$0xff]
        %v456 = vld [vmem:[%s335 + $0x18] sm:$0xff]
        %v457 = vld [vmem:[%s335 + $0x20] sm:$0xff]
        %v458 = vld [vmem:[%s335 + $0x28] sm:$0xff]
        %v459 = vld [vmem:[%s335 + $0x30] sm:$0xff]
        %v460 = vld [vmem:[%s335 + $0x38] sm:$0xff]
        %v461 = vld [vmem:[%s335 + $0x40] sm:$0xff]
        %v462 = vld [vmem:[%s335 + $0x48] sm:$0xff]
        %v463 = vld [vmem:[%s335 + $0x50] sm:$0xff]
        %v464 = vld [vmem:[%s335 + $0x58] sm:$0xff]
        %v465 = vld [vmem:[%s335 + $0x60] sm:$0xff]
        %v466 = vld [vmem:[%s335 + $0x68] sm:$0xff]
        %v467 = vld [vmem:[%s335 + $0x70] sm:$0xff]
        %v468 = vld [vmem:[%s335 + $0x78] sm:$0xff]
        %v469 = vld [vmem:[%s335 + $0x80] sm:$0xff]
        %v470 = vld [vmem:[%s335 + $0x88] sm:$0xff]
        %v471 = vld [vmem:[%s335 + $0x90] sm:$0xff]
        %v472 = vld [vmem:[%s335 + $0x98] sm:$0xff]
        %v473 = vld [vmem:[%s335 + $0xa0] sm:$0xff]
        %v474 = vld [vmem:[%s335 + $0xa8] sm:$0xff]
        %v475 = vld [vmem:[%s335 + $0xb0] sm:$0xff]
        %v476 = vld [vmem:[%s335 + $0xb8] sm:$0xff]
        %v477 = vld [vmem:[%s335 + $0xc0] sm:$0xff]
        %v478 = vld [vmem:[%s335 + $0xc8] sm:$0xff]
        %v479 = vld [vmem:[%s335 + $0xd0] sm:$0xff]
        %v480 = vld [vmem:[%s335 + $0xd8] sm:$0xff]
        %v481 = vld [vmem:[%s335 + $0xe0] sm:$0xff]
        %v482 = vld [vmem:[%s335 + $0xe8] sm:$0xff]
        %v483 = vld [vmem:[%s335 + $0xf0] sm:$0xff]
        %v484 = vld [vmem:[%s335 + $0xf8] sm:$0xff]
        %v485 = vld [vmem:[%s335 + $0x100] sm:$0xff]
        %v486 = vld [vmem:[%s335 + $0x108] sm:$0xff]
        %v487 = vld [vmem:[%s335 + $0x110] sm:$0xff]
        %v488 = vld [vmem:[%s335 + $0x118] sm:$0xff]
        %v489 = vld [vmem:[%s335 + $0x120] sm:$0xff]
        %v490 = vld [vmem:[%s335 + $0x128] sm:$0xff]
        %v491 = vld [vmem:[%s335 + $0x130] sm:$0xff]
        %v492 = vld [vmem:[%s335 + $0x138] sm:$0xff]
        %v493 = vld [vmem:[%s335 + $0x140] sm:$0xff]
        %v494 = vld [vmem:[%s335 + $0x148] sm:$0xff]
        %v495 = vld [vmem:[%s335 + $0x150] sm:$0xff]
        %v496 = vld [vmem:[%s335 + $0x158] sm:$0xff]
        %v497 = vld [vmem:[%s335 + $0x160] sm:$0xff]
        %v498 = vld [vmem:[%s335 + $0x168] sm:$0xff]
        %v499 = vld [vmem:[%s335 + $0x170] sm:$0xff]
        %v500 = vld [vmem:[%s335 + $0x178] sm:$0xff]
        %v501 = vld [vmem:[%s392] sm:$0xff]
        %v502 = vld [vmem:[%s392 + $0x8] sm:$0xff]
        %v503 = vld [vmem:[%s392 + $0x10] sm:$0xff]
        %v504 = vld [vmem:[%s392 + $0x18] sm:$0xff]
        %v505 = vld [vmem:[%s392 + $0x20] sm:$0xff]
        %v506 = vld [vmem:[%s392 + $0x28] sm:$0xff]
        %v507 = vld [vmem:[%s392 + $0x30] sm:$0xff]
        %v508 = vld [vmem:[%s392 + $0x38] sm:$0xff]
        %v509 = vld [vmem:[%s392 + $0x40] sm:$0xff]
        %v510 = vld [vmem:[%s392 + $0x48] sm:$0xff]
        %v511 = vld [vmem:[%s392 + $0x50] sm:$0xff]
        %v512 = vld [vmem:[%s392 + $0x58] sm:$0xff]
        %v513 = vld [vmem:[%s392 + $0x60] sm:$0xff]
        %v514 = vld [vmem:[%s392 + $0x68] sm:$0xff]
        %v515 = vld [vmem:[%s392 + $0x70] sm:$0xff]
        %v516 = vld [vmem:[%s392 + $0x78] sm:$0xff]
        %v517 = vld [vmem:[%s392 + $0x80] sm:$0xff]
        %v518 = vld [vmem:[%s392 + $0x88] sm:$0xff]
        %v519 = vld [vmem:[%s392 + $0x90] sm:$0xff]
        %v520 = vld [vmem:[%s392 + $0x98] sm:$0xff]
        %v521 = vld [vmem:[%s392 + $0xa0] sm:$0xff]
        %v522 = vld [vmem:[%s392 + $0xa8] sm:$0xff]
        %v523 = vld [vmem:[%s392 + $0xb0] sm:$0xff]
        %v524 = vld [vmem:[%s392 + $0xb8] sm:$0xff]
        %v525 = vld [vmem:[%s392 + $0xc0] sm:$0xff]
        %v526 = vld [vmem:[%s392 + $0xc8] sm:$0xff]
        %v527 = vld [vmem:[%s392 + $0xd0] sm:$0xff]
        %v528 = vld [vmem:[%s392 + $0xd8] sm:$0xff]
        %v529 = vld [vmem:[%s392 + $0xe0] sm:$0xff]
        %v530 = vld [vmem:[%s392 + $0xe8] sm:$0xff]
        %v531 = vld [vmem:[%s392 + $0xf0] sm:$0xff]
        %v532 = vld [vmem:[%s392 + $0xf8] sm:$0xff]
        %v533 = vld [vmem:[%s392 + $0x100] sm:$0xff]
        %v534 = vld [vmem:[%s392 + $0x108] sm:$0xff]
        %v535 = vld [vmem:[%s392 + $0x110] sm:$0xff]
        %v536 = vld [vmem:[%s392 + $0x118] sm:$0xff]
        %v537 = vld [vmem:[%s392 + $0x120] sm:$0xff]
        %v538 = vld [vmem:[%s392 + $0x128] sm:$0xff]
        %v539 = vld [vmem:[%s392 + $0x130] sm:$0xff]
        %v540 = vld [vmem:[%s392 + $0x138] sm:$0xff]
        %v541 = vld [vmem:[%s392 + $0x140] sm:$0xff]
        %v542 = vld [vmem:[%s392 + $0x148] sm:$0xff]
        %v543 = vld [vmem:[%s392 + $0x150] sm:$0xff]
        %v544 = vld [vmem:[%s392 + $0x158] sm:$0xff]
        %v545 = vld [vmem:[%s392 + $0x160] sm:$0xff]
        %v546 = vld [vmem:[%s392 + $0x168] sm:$0xff]
        %v547 = vld [vmem:[%s392 + $0x170] sm:$0xff]
        %v548 = vld [vmem:[%s392 + $0x178] sm:$0xff]
        %549 = vmatpush.msra.mxu0 %v516
        %550 = vmatpush.msra.mxu0 %v515
        %551 = vmatpush.msra.mxu0 %v514
        %552 = vmatpush.msra.mxu0 %v513
        %553 = vmatpush.msra.mxu0 %v512
        %554 = vmatpush.msra.mxu0 %v511
        %555 = vmatpush.msra.mxu0 %v510
        %556 = vmatpush.msra.mxu0 %v509
        %557 = vmatpush.msra.mxu0 %v508
        %558 = vmatpush.msra.mxu0 %v507
        %559 = vmatpush.msra.mxu0 %v506
        %560 = vmatpush.msra.mxu0 %v505
        %561 = vmatpush.msra.mxu0 %v504
        %562 = vmatpush.msra.mxu0 %v503
        %563 = vmatpush.msra.mxu0 %v502
        %564 = vmatpush.msra.mxu0 %v501
        %565 = vmatmul.f32.gmra.mxu0 %v453
        %v566 = vpop.f32.mrf.mxu0
        %v567 = vadd.f32 0.0, %v566
        %568 = vmatmul.f32.gmra.mxu0 %v456
        %v569 = vpop.f32.mrf.mxu0
        %v570 = vadd.f32 0.0, %v569
        %571 = vmatmul.f32.gmra.mxu0 %v459
        %v572 = vpop.f32.mrf.mxu0
        %v573 = vadd.f32 0.0, %v572
        %574 = vmatmul.f32.gmra.mxu0 %v462
        %v575 = vpop.f32.mrf.mxu0
        %v576 = vadd.f32 0.0, %v575
        %577 = vmatmul.f32.gmra.mxu0 %v465
        %v578 = vpop.f32.mrf.mxu0
        %v579 = vadd.f32 0.0, %v578
        %580 = vmatmul.f32.gmra.mxu0 %v468
        %v581 = vpop.f32.mrf.mxu0
        %v582 = vadd.f32 0.0, %v581
        %583 = vmatmul.f32.gmra.mxu0 %v471
        %v584 = vpop.f32.mrf.mxu0
        %v585 = vadd.f32 0.0, %v584
        %586 = vmatmul.f32.gmra.mxu0 %v474
        %v587 = vpop.f32.mrf.mxu0
        %v588 = vadd.f32 0.0, %v587
        %589 = vmatmul.f32.gmra.mxu0 %v477
        %v590 = vpop.f32.mrf.mxu0
        %v591 = vadd.f32 0.0, %v590
        %592 = vmatmul.f32.gmra.mxu0 %v480
        %v593 = vpop.f32.mrf.mxu0
        %v594 = vadd.f32 0.0, %v593
        %595 = vmatmul.f32.gmra.mxu0 %v483
        %v596 = vpop.f32.mrf.mxu0
        %v597 = vadd.f32 0.0, %v596
        %598 = vmatmul.f32.gmra.mxu0 %v486
        %v599 = vpop.f32.mrf.mxu0
        %v600 = vadd.f32 0.0, %v599
        %601 = vmatmul.f32.gmra.mxu0 %v489
        %v602 = vpop.f32.mrf.mxu0
        %v603 = vadd.f32 0.0, %v602
        %604 = vmatmul.f32.gmra.mxu0 %v492
        %v605 = vpop.f32.mrf.mxu0
        %v606 = vadd.f32 0.0, %v605
        %607 = vmatmul.f32.gmra.mxu0 %v495
        %v608 = vpop.f32.mrf.mxu0
        %v609 = vadd.f32 0.0, %v608
        %610 = vmatmul.f32.gmra.mxu0 %v498
        %v611 = vpop.f32.mrf.mxu0
        %v612 = vadd.f32 0.0, %v611
        %613 = vdwg.mxu0
        %614 = vmatpush.msra.mxu0 %v532
        %615 = vmatpush.msra.mxu0 %v531
        %616 = vmatpush.msra.mxu0 %v530
        %617 = vmatpush.msra.mxu0 %v529
        %618 = vmatpush.msra.mxu0 %v528
        %619 = vmatpush.msra.mxu0 %v527
        %620 = vmatpush.msra.mxu0 %v526
        %621 = vmatpush.msra.mxu0 %v525
        %622 = vmatpush.msra.mxu0 %v524
        %623 = vmatpush.msra.mxu0 %v523
        %624 = vmatpush.msra.mxu0 %v522
        %625 = vmatpush.msra.mxu0 %v521
        %626 = vmatpush.msra.mxu0 %v520
        %627 = vmatpush.msra.mxu0 %v519
        %628 = vmatpush.msra.mxu0 %v518
        %629 = vmatpush.msra.mxu0 %v517
        %630 = vmatmul.f32.gmra.mxu0 %v454
        %v631 = vpop.f32.mrf.mxu0
        %v632 = vadd.f32 %v567, %v631
        %633 = vmatmul.f32.gmra.mxu0 %v457
        %v634 = vpop.f32.mrf.mxu0
        %v635 = vadd.f32 %v570, %v634
        %636 = vmatmul.f32.gmra.mxu0 %v460
        %v637 = vpop.f32.mrf.mxu0
        %v638 = vadd.f32 %v573, %v637
        %639 = vmatmul.f32.gmra.mxu0 %v463
        %v640 = vpop.f32.mrf.mxu0
        %v641 = vadd.f32 %v576, %v640
        %642 = vmatmul.f32.gmra.mxu0 %v466
        %v643 = vpop.f32.mrf.mxu0
        %v644 = vadd.f32 %v579, %v643
        %645 = vmatmul.f32.gmra.mxu0 %v469
        %v646 = vpop.f32.mrf.mxu0
        %v647 = vadd.f32 %v582, %v646
        %648 = vmatmul.f32.gmra.mxu0 %v472
        %v649 = vpop.f32.mrf.mxu0
        %v650 = vadd.f32 %v585, %v649
        %651 = vmatmul.f32.gmra.mxu0 %v475
        %v652 = vpop.f32.mrf.mxu0
        %v653 = vadd.f32 %v588, %v652
        %654 = vmatmul.f32.gmra.mxu0 %v478
        %v655 = vpop.f32.mrf.mxu0
        %v656 = vadd.f32 %v591, %v655
        %657 = vmatmul.f32.gmra.mxu0 %v481
        %v658 = vpop.f32.mrf.mxu0
        %v659 = vadd.f32 %v594, %v658
        %660 = vmatmul.f32.gmra.mxu0 %v484
        %v661 = vpop.f32.mrf.mxu0
        %v662 = vadd.f32 %v597, %v661
        %663 = vmatmul.f32.gmra.mxu0 %v487
        %v664 = vpop.f32.mrf.mxu0
        %v665 = vadd.f32 %v600, %v664
        %666 = vmatmul.f32.gmra.mxu0 %v490
        %v667 = vpop.f32.mrf.mxu0
        %v668 = vadd.f32 %v603, %v667
        %669 = vmatmul.f32.gmra.mxu0 %v493
        %v670 = vpop.f32.mrf.mxu0
        %v671 = vadd.f32 %v606, %v670
        %672 = vmatmul.f32.gmra.mxu0 %v496
        %v673 = vpop.f32.mrf.mxu0
        %v674 = vadd.f32 %v609, %v673
        %675 = vmatmul.f32.gmra.mxu0 %v499
        %v676 = vpop.f32.mrf.mxu0
        %v677 = vadd.f32 %v612, %v676
        %678 = vdwg.mxu0
        %679 = vmatpush.msra.mxu0 %v548
        %680 = vmatpush.msra.mxu0 %v547
        %681 = vmatpush.msra.mxu0 %v546
        %682 = vmatpush.msra.mxu0 %v545
        %683 = vmatpush.msra.mxu0 %v544
        %684 = vmatpush.msra.mxu0 %v543
        %685 = vmatpush.msra.mxu0 %v542
        %686 = vmatpush.msra.mxu0 %v541
        %687 = vmatpush.msra.mxu0 %v540
        %688 = vmatpush.msra.mxu0 %v539
        %689 = vmatpush.msra.mxu0 %v538
        %690 = vmatpush.msra.mxu0 %v537
        %691 = vmatpush.msra.mxu0 %v536
        %692 = vmatpush.msra.mxu0 %v535
        %693 = vmatpush.msra.mxu0 %v534
        %694 = vmatpush.msra.mxu0 %v533
        %695 = vmatmul.f32.gmra.mxu0 %v455
        %v696 = vpop.f32.mrf.mxu0
        %v697 = vadd.f32 %v632, %v696
        %698 = vmatmul.f32.gmra.mxu0 %v458
        %v699 = vpop.f32.mrf.mxu0
        %v700 = vadd.f32 %v635, %v699
        %701 = vmatmul.f32.gmra.mxu0 %v461
        %v702 = vpop.f32.mrf.mxu0
        %v703 = vadd.f32 %v638, %v702
        %704 = vmatmul.f32.gmra.mxu0 %v464
        %v705 = vpop.f32.mrf.mxu0
        %v706 = vadd.f32 %v641, %v705
        %707 = vmatmul.f32.gmra.mxu0 %v467
        %v708 = vpop.f32.mrf.mxu0
        %v709 = vadd.f32 %v644, %v708
        %710 = vmatmul.f32.gmra.mxu0 %v470
        %v711 = vpop.f32.mrf.mxu0
        %v712 = vadd.f32 %v647, %v711
        %713 = vmatmul.f32.gmra.mxu0 %v473
        %v714 = vpop.f32.mrf.mxu0
        %v715 = vadd.f32 %v650, %v714
        %716 = vmatmul.f32.gmra.mxu0 %v476
        %v717 = vpop.f32.mrf.mxu0
        %v718 = vadd.f32 %v653, %v717
        %719 = vmatmul.f32.gmra.mxu0 %v479
        %v720 = vpop.f32.mrf.mxu0
        %v721 = vadd.f32 %v656, %v720
        %722 = vmatmul.f32.gmra.mxu0 %v482
        %v723 = vpop.f32.mrf.mxu0
        %v724 = vadd.f32 %v659, %v723
        %725 = vmatmul.f32.gmra.mxu0 %v485
        %v726 = vpop.f32.mrf.mxu0
        %v727 = vadd.f32 %v662, %v726
        %728 = vmatmul.f32.gmra.mxu0 %v488
        %v729 = vpop.f32.mrf.mxu0
        %v730 = vadd.f32 %v665, %v729
        %731 = vmatmul.f32.gmra.mxu0 %v491
        %v732 = vpop.f32.mrf.mxu0
        %v733 = vadd.f32 %v668, %v732
        %734 = vmatmul.f32.gmra.mxu0 %v494
        %v735 = vpop.f32.mrf.mxu0
        %v736 = vadd.f32 %v671, %v735
        %737 = vmatmul.f32.gmra.mxu0 %v497
        %v738 = vpop.f32.mrf.mxu0
        %v739 = vadd.f32 %v674, %v738
        %740 = vmatmul.f32.gmra.mxu0 %v500
        %v741 = vpop.f32.mrf.mxu0
        %v742 = vadd.f32 %v677, %v741
        %743 = vdwg.mxu0
        %v744 = vadd.f32 %v437, %v697
        %v745 = vadd.f32 %v438, %v700
        %v746 = vadd.f32 %v439, %v703
        %v747 = vadd.f32 %v440, %v706
        %v748 = vadd.f32 %v441, %v709
        %v749 = vadd.f32 %v442, %v712
        %v750 = vadd.f32 %v443, %v715
        %v751 = vadd.f32 %v444, %v718
        %v752 = vadd.f32 %v445, %v721
        %v753 = vadd.f32 %v446, %v724
        %v754 = vadd.f32 %v447, %v727
        %v755 = vadd.f32 %v448, %v730
        %v756 = vadd.f32 %v449, %v733
        %v757 = vadd.f32 %v450, %v736
        %v758 = vadd.f32 %v451, %v739
        %v759 = vadd.f32 %v452, %v742
        %760 = vst [vmem:[#allocation2] sm:$0xff] %v744
        %761 = vst [vmem:[#allocation2 + $0x8] sm:$0xff] %v745
        %762 = vst [vmem:[#allocation2 + $0x10] sm:$0xff] %v746
        %763 = vst [vmem:[#allocation2 + $0x18] sm:$0xff] %v747
        %764 = vst [vmem:[#allocation2 + $0x20] sm:$0xff] %v748
        %765 = vst [vmem:[#allocation2 + $0x28] sm:$0xff] %v749
        %766 = vst [vmem:[#allocation2 + $0x30] sm:$0xff] %v750
        %767 = vst [vmem:[#allocation2 + $0x38] sm:$0xff] %v751
        %768 = vst [vmem:[#allocation2 + $0x40] sm:$0xff] %v752
        %769 = vst [vmem:[#allocation2 + $0x48] sm:$0xff] %v753
        %770 = vst [vmem:[#allocation2 + $0x50] sm:$0xff] %v754
        %771 = vst [vmem:[#allocation2 + $0x58] sm:$0xff] %v755
        %772 = vst [vmem:[#allocation2 + $0x60] sm:$0xff] %v756
        %773 = vst [vmem:[#allocation2 + $0x68] sm:$0xff] %v757
        %774 = vst [vmem:[#allocation2 + $0x70] sm:$0xff] %v758
        %775 = vst [vmem:[#allocation2 + $0x78] sm:$0xff] %v759
        %p776 = scmp.eq.s32.totalorder %s23, 2
        // Predicated region
        $region56: #{bottleneck_forward.8} parent=46 // pred_check
          %p777 = pneg %p776
        $region57: #{bottleneck_forward.8} parent=46 // pred_check_branch
          %779 = sbr.rel (%p777) target = $region59
        $region58: #{bottleneck_forward.8} parent=46 // pred_region
          %v780 = vld [vmem:[#allocation2] sm:$0xff]
          %v781 = vld [vmem:[#allocation2 + $0x8] sm:$0xff]
          %v782 = vld [vmem:[#allocation2 + $0x10] sm:$0xff]
          %v783 = vld [vmem:[#allocation2 + $0x18] sm:$0xff]
          %v784 = vld [vmem:[#allocation2 + $0x20] sm:$0xff]
          %v785 = vld [vmem:[#allocation2 + $0x28] sm:$0xff]
          %v786 = vld [vmem:[#allocation2 + $0x30] sm:$0xff]
          %v787 = vld [vmem:[#allocation2 + $0x38] sm:$0xff]
          %v788 = vld [vmem:[#allocation2 + $0x40] sm:$0xff]
          %v789 = vld [vmem:[#allocation2 + $0x48] sm:$0xff]
          %v790 = vld [vmem:[#allocation2 + $0x50] sm:$0xff]
          %v791 = vld [vmem:[#allocation2 + $0x58] sm:$0xff]
          %v792 = vld [vmem:[#allocation2 + $0x60] sm:$0xff]
          %v793 = vld [vmem:[#allocation2 + $0x68] sm:$0xff]
          %v794 = vld [vmem:[#allocation2 + $0x70] sm:$0xff]
          %v795 = vld [vmem:[#allocation2 + $0x78] sm:$0xff]
          %796 = vst [vmem:[%s401] sm:$0xff] %v780
          %797 = vst [vmem:[%s401 + $0x8] sm:$0xff] %v781
          %798 = vst [vmem:[%s401 + $0x10] sm:$0xff] %v782
          %799 = vst [vmem:[%s401 + $0x18] sm:$0xff] %v783
          %800 = vst [vmem:[%s401 + $0x20] sm:$0xff] %v784
          %801 = vst [vmem:[%s401 + $0x28] sm:$0xff] %v785
          %802 = vst [vmem:[%s401 + $0x30] sm:$0xff] %v786
          %803 = vst [vmem:[%s401 + $0x38] sm:$0xff] %v787
          %804 = vst [vmem:[%s401 + $0x40] sm:$0xff] %v788
          %805 = vst [vmem:[%s401 + $0x48] sm:$0xff] %v789
          %806 = vst [vmem:[%s401 + $0x50] sm:$0xff] %v790
          %807 = vst [vmem:[%s401 + $0x58] sm:$0xff] %v791
          %808 = vst [vmem:[%s401 + $0x60] sm:$0xff] %v792
          %809 = vst [vmem:[%s401 + $0x68] sm:$0xff] %v793
          %810 = vst [vmem:[%s401 + $0x70] sm:$0xff] %v794
          %811 = vst [vmem:[%s401 + $0x78] sm:$0xff] %v795
          %v812 = vadd.f32 %v780, %v781
          %v813 = vadd.f32 %v812, %v782
          %v814 = vadd.f32 %v813, %v783
          %v815 = vadd.f32 %v814, %v784
          %v816 = vadd.f32 %v815, %v785
          %v817 = vadd.f32 %v816, %v786
          %v818 = vadd.f32 %v817, %v787
          %v819 = vadd.f32 %v818, %v788
          %v820 = vadd.f32 %v819, %v789
          %v821 = vadd.f32 %v820, %v790
          %v822 = vadd.f32 %v821, %v791
          %v823 = vadd.f32 %v822, %v792
          %v824 = vadd.f32 %v823, %v793
          %v825 = vadd.f32 %v824, %v794
          %v826 = vadd.f32 %v825, %v795
          %v827 = vrot.slane %v826, 4
          %v828 = vadd.f32 %v826, %v827
          %v829 = vrot.slane %v828, 2
          %v830 = vadd.f32 %v828, %v829
          %v831 = vrot.slane %v830, 1
          %v832 = vadd.f32 %v830, %v831
          %v833 = vmul.f32 %v780, %v780
          %v834 = vmul.f32 %v781, %v781
          %v835 = vmul.f32 %v782, %v782
          %v836 = vmul.f32 %v783, %v783
          %v837 = vmul.f32 %v784, %v784
          %v838 = vmul.f32 %v785, %v785
          %v839 = vmul.f32 %v786, %v786
          %v840 = vmul.f32 %v787, %v787
          %v841 = vmul.f32 %v788, %v788
          %v842 = vmul.f32 %v789, %v789
          %v843 = vmul.f32 %v790, %v790
          %v844 = vmul.f32 %v791, %v791
          %v845 = vmul.f32 %v792, %v792
          %v846 = vmul.f32 %v793, %v793
          %v847 = vmul.f32 %v794, %v794
          %v848 = vmul.f32 %v795, %v795
          %v849 = vadd.f32 %v833, %v834
          %v850 = vadd.f32 %v849, %v835
          %v851 = vadd.f32 %v850, %v836
          %v852 = vadd.f32 %v851, %v837
          %v853 = vadd.f32 %v852, %v838
          %v854 = vadd.f32 %v853, %v839
          %v855 = vadd.f32 %v854, %v840
          %v856 = vadd.f32 %v855, %v841
          %v857 = vadd.f32 %v856, %v842
          %v858 = vadd.f32 %v857, %v843
          %v859 = vadd.f32 %v858, %v844
          %v860 = vadd.f32 %v859, %v845
          %v861 = vadd.f32 %v860, %v846
          %v862 = vadd.f32 %v861, %v847
          %v863 = vadd.f32 %v862, %v848
          %v864 = vrot.slane %v863, 4
          %v865 = vadd.f32 %v863, %v864
          %v866 = vrot.slane %v865, 2
          %v867 = vadd.f32 %v865, %v866
          %v868 = vrot.slane %v867, 1
          %v869 = vadd.f32 %v867, %v868
          %870 = vst [vmem:[%s409] sm:$0xff] %v832
          %871 = vst [vmem:[%s416] sm:$0xff] %v869
        $region59: #{bottleneck_forward.8} parent=46 // pred_fallthru
          _
        %s872 = smul.u32 16, %s21
        %p873 = scmp.lt.s32.totalorder %s872, 15
        %s874 = scalar_select %p873, %s872, 15
        %p875 = scmp.lt.s32.totalorder %s22, 0
        %s876 = scalar_select %p875, %s22, 0
        %s877 = sadd.s32 %s876, %s874
        %s878 = smul.addr %s877, 8
        %s879 = scalar_lea.vmem %s2, %s878
        %p880 = scmp.lt.s32.totalorder %s21, 0
        %s881 = scalar_select %p880, %s21, 0
        %p882 = scmp.lt.s32.totalorder %s22, 0
        %s883 = scalar_select %p882, %s22, 0
        %s884 = sadd.s32 %s883, %s881
        %s885 = smul.addr %s884, 8
        %s886 = scalar_lea.vmem %s3, %s885
        %p887 = scmp.lt.s32.totalorder %s21, 0
        %s888 = scalar_select %p887, %s21, 0
        %p889 = scmp.lt.s32.totalorder %s22, 0
        %s890 = scalar_select %p889, %s22, 0
        %s891 = sadd.s32 %s890, %s888
        %s892 = smul.addr %s891, 8
        %s893 = scalar_lea.vmem %s4, %s892
        // Predicated region
        $region60: #{bottleneck_forward.8} parent=46 // pred_check
          %p894 = pneg %p111
        $region61: #{bottleneck_forward.8} parent=46 // pred_check_branch
          %896 = sbr.rel (%p894) target = $region63
        $region62: #{bottleneck_forward.8} parent=46 // pred_region
          %s897 = smul.u32 16, %s21
        $region63: #{bottleneck_forward.8} parent=46 // pred_fallthru
          _
        // Predicated region
        $region64: #{bottleneck_forward.8} parent=46 // pred_check
          %p898 = pneg %p139
        $region65: #{bottleneck_forward.8} parent=46 // pred_check_branch
          %900 = sbr.rel (%p898) target = $region67
        $region66: #{bottleneck_forward.8} parent=46 // pred_region
          _
        $region67: #{bottleneck_forward.8} parent=46 // pred_fallthru
          _
        // Predicated region
        $region68: #{bottleneck_forward.8} parent=46 // pred_check
          %p901 = pneg %p167
        $region69: #{bottleneck_forward.8} parent=46 // pred_check_branch
          %903 = sbr.rel (%p901) target = $region71
        $region70: #{bottleneck_forward.8} parent=46 // pred_region
          _
        $region71: #{bottleneck_forward.8} parent=46 // pred_fallthru
          _
        // Predicated region
        $region72: #{bottleneck_forward.8} parent=46 // pred_check
          %p904 = pneg %p111
        $region73: #{bottleneck_forward.8} parent=46 // pred_check_branch
          %906 = sbr.rel (%p904) target = $region75
        $region74: #{bottleneck_forward.8} parent=46 // pred_region
          %s907 = smul.u32 16, %s21
          %p908 = scmp.lt.s32.totalorder %s907, 15
          %s909 = scalar_select %p908, %s907, 15
          %p910 = scmp.lt.s32.totalorder %s22, 0
          %s911 = scalar_select %p910, %s22, 0
          %s912 = sadd.s32 %s911, %s909
          %s913 = smul.addr %s912, 8
          %s914 = scalar_lea.vmem %s2, %s913
        $region75: #{bottleneck_forward.8} parent=46 // pred_fallthru
          _
        // Predicated region
        $region76: #{bottleneck_forward.8} parent=46 // pred_check
          %p915 = pneg %p139
        $region77: #{bottleneck_forward.8} parent=46 // pred_check_branch
          %917 = sbr.rel (%p915) target = $region79
        $region78: #{bottleneck_forward.8} parent=46 // pred_region
          %p918 = scmp.lt.s32.totalorder %s21, 0
          %s919 = scalar_select %p918, %s21, 0
          %p920 = scmp.lt.s32.totalorder %s22, 0
          %s921 = scalar_select %p920, %s22, 0
          %s922 = sadd.s32 %s921, %s919
          %s923 = smul.addr %s922, 8
          %s924 = scalar_lea.vmem %s3, %s923
        $region79: #{bottleneck_forward.8} parent=46 // pred_fallthru
          _
        // Predicated region
        $region80: #{bottleneck_forward.8} parent=46 // pred_check
          %p925 = pneg %p167
        $region81: #{bottleneck_forward.8} parent=46 // pred_check_branch
          %927 = sbr.rel (%p925) target = $region83
        $region82: #{bottleneck_forward.8} parent=46 // pred_region
          %p928 = scmp.lt.s32.totalorder %s21, 0
          %s929 = scalar_select %p928, %s21, 0
          %p930 = scmp.lt.s32.totalorder %s22, 0
          %s931 = scalar_select %p930, %s22, 0
          %s932 = sadd.s32 %s931, %s929
          %s933 = smul.addr %s932, 8
          %s934 = scalar_lea.vmem %s4, %s933
        $region83: #{bottleneck_forward.8} parent=46 // pred_fallthru
          _
      $region47: #{bottleneck_forward.8} parent=5 // pred_fallthru
        _
      %p935 = scmp.le.s32.totalorder 2, %s11
      // Predicated region
      $region84: #{bottleneck_forward.8} parent=5 // pred_check
        %p936 = pneg %p935
      $region85: #{bottleneck_forward.8} parent=5 // pred_check_branch
        %938 = sbr.rel (%p936) target = $region87
      $region86: #{bottleneck_forward.8} parent=5 // pred_region
        %s939 = ssub.s32 %s11, 2
      $region87: #{bottleneck_forward.8} parent=5 // pred_fallthru
        _
    $region6: #{bottleneck_forward.8} parent=1 // loop_footer
      %s15 = sadd.s32 1, %s11
    $region7: #{bottleneck_forward.8} parent=1 // loop_footer_branch
      %10 = sbr.rel target = $region3
    $region8: #{bottleneck_forward.8} parent=1 // loop_exit
      _

</llo_original>
